<compile_context>
chip_gen: v6e
topology: v6e:2x2x1
jax: 0.10.0
libtpu: 0.0.40
codegen_flags: <defaults>
</compile_context>

<pallas_src>
import numpy as np

import jax
import jax.numpy as jnp
from jax.experimental import pallas as pl
from jax.experimental.pallas import tpu as pltpu


# ----------------------------------------------------------------------------
# Fused Pallas kernel: (sel @ ef) mean + [BN -> LeakyReLU -> Linear] x 3
# ----------------------------------------------------------------------------
def _bn_lrelu(x, gamma, beta, rmask, inv_cnt, eps=1e-5, slope=0.01):
    """BatchNorm (batch stats, biased var, padded rows masked out) + LeakyReLU."""
    mu = jnp.sum(x * rmask, axis=0, keepdims=True) * inv_cnt
    d = (x - mu) * rmask
    var = jnp.sum(d * d, axis=0, keepdims=True) * inv_cnt
    y = (x - mu) * jax.lax.rsqrt(var + eps) * gamma + beta
    return jnp.where(y >= 0.0, y, slope * y)


def _make_value_kernel(n_subs):
    """Kernel factory; n_subs (per-group valid-row counts) are baked constants."""
    n_subs = tuple(int(n) for n in n_subs)

    def kernel(sel_ref, ef_ref, vec_ref, w1_ref, w2_ref, w3_ref, out_ref):
        """One grid step == one value head (grid=(2,), 'parallel').

        sel_ref : (G, BPAD, EPAD) f32  per-group averaging matrices (shared by heads)
        ef_ref  : (EPAD, F)       f32  this head's edge features (zero-padded rows)
        vec_ref : (9, DMAX)       f32  packed bn1_g,bn1_b,bn2_g,bn2_b,bn3_g,bn3_b,b1,b2,b3
        w1/w2/w3: (F,H),(H,H),(H,CPAD) this head's linear weights
        out_ref : (G, BPAD, CPAD) f32  lane-dense output slab
        """
        G, BPAD, _ = sel_ref.shape
        F = ef_ref.shape[1]
        H = w1_ref.shape[1]
        C = w3_ref.shape[1]

        # Hoisted loads (one DMA'd block each; reused across all groups).
        ef = ef_ref[...]
        w1 = w1_ref[...]
        w2 = w2_ref[...]
        w3 = w3_ref[...]

        # Packed per-head parameters: static ref slices (cheap, read once).
        bn1_g, bn1_b = vec_ref[0:1, :F], vec_ref[1:2, :F]
        bn2_g, bn2_b = vec_ref[2:3, :H], vec_ref[3:4, :H]
        bn3_g, bn3_b = vec_ref[4:5, :H], vec_ref[5:6, :H]
        b1, b2, b3 = vec_ref[6:7, :H], vec_ref[7:8, :H], vec_ref[8:9, :C]

        row_id = jax.lax.broadcasted_iota(jnp.int32, (BPAD, 1), 0)

        # G is small and static; each unrolled body is a handful of tiny 2-D ops.
        for g in range(G):
            n_sub = n_subs[g]
            rmask = (row_id < n_sub).astype(jnp.float32)      # (BPAD, 1)
            inv_cnt = 1.0 / float(n_sub)

            # Fused gather + per-subgraph mean: one MXU matmul.
            h = jnp.dot(sel_ref[g], ef,
                        preferred_element_type=jnp.float32)    # (BPAD, F)

            h = jnp.dot(_bn_lrelu(h, bn1_g, bn1_b, rmask, inv_cnt), w1,
                        preferred_element_type=jnp.float32) + b1
            h = jnp.dot(_bn_lrelu(h, bn2_g, bn2_b, rmask, inv_cnt), w2,
                        preferred_element_type=jnp.float32) + b2
            h = jnp.dot(_bn_lrelu(h, bn3_g, bn3_b, rmask, inv_cnt), w3,
                        preferred_element_type=jnp.float32) + b3

            out_ref[g] = h.astype(out_ref.dtype)               # (BPAD, CPAD) store

    return kernel


# ----------------------------------------------------------------------------
# Wrapper: build selection matrices, pack params, one pallas_call for everything
# ----------------------------------------------------------------------------
def _round_up(x, m):
    return ((x + m - 1) // m) * m


def _pack_head_params(p, dmax, cpad):
    """Pack the 9 per-head vectors into one (9, dmax) slab; lane-pad w3."""
    def row(v):
        v = v.reshape(1, -1).astype(jnp.float32)
        return jnp.pad(v, ((0, 0), (0, dmax - v.shape[1])))
    vec = jnp.concatenate([
        row(p["bn1_g"]), row(p["bn1_b"]),
        row(p["bn2_g"]), row(p["bn2_b"]),
        row(p["bn3_g"]), row(p["bn3_b"]),
        row(p["b1"]), row(p["b2"]), row(p["b3"]),
    ], axis=0)                                            # (9, dmax)
    w3 = p["w3"].astype(jnp.float32)
    w3 = jnp.pad(w3, ((0, 0), (0, cpad - w3.shape[1])))
    return vec, p["w1"].astype(jnp.float32), p["w2"].astype(jnp.float32), w3


def fused_value_heads(ef1, ef2, sub_graphs, s_subgraph, params1, params2, n_classes):
    """Run value1/value2 for every subgraph-size group in ONE pallas_call."""
    E, F = ef1.shape
    H = params1["w1"].shape[1]
    G = len(s_subgraph)

    CPAD = _round_up(max(n_classes, 1), 128)              # lane-dense output
    DMAX = max(F, H, CPAD)
    EPAD = _round_up(E, 8)                                # sublane-aligned ef rows

    sg_sizes = [int(s) for s in s_subgraph]
    n_subs = [int(np.asarray(jax.device_get(sub_graphs[i])).shape[0]) // sg_sizes[i]
              for i in range(G)]
    BPAD = _round_up(max(n_subs), 8)                      # sublane-aligned batch

    # Per-group averaging matrices: sel[g] @ ef == mean of each subgraph's rows
    # (duplicate indices accumulate, matching torch's gather-then-mean).
    def build_sel(idx_flat, sg, n_sub):
        idx = jnp.asarray(idx_flat, jnp.int32).reshape(n_sub, sg)
        onehot = jax.nn.one_hot(idx, EPAD, dtype=jnp.float32)   # (n_sub, sg, EPAD)
        s = jnp.sum(onehot, axis=1) * (1.0 / sg)                # (n_sub, EPAD)
        return jnp.pad(s, ((0, BPAD - n_sub), (0, 0)))
    sel = jnp.stack([build_sel(sub_graphs[i], sg_sizes[i], n_subs[i])
                     for i in range(G)], axis=0)                # (G, BPAD, EPAD)

    # Head-stacked edge features, row-padded with zeros.
    ef = jnp.pad(jnp.stack([ef1, ef2], axis=0).astype(jnp.float32),
                 ((0, 0), (0, EPAD - E), (0, 0)))               # (2, EPAD, F)

    v1 = _pack_head_params(params1, DMAX, CPAD)
    v2 = _pack_head_params(params2, DMAX, CPAD)
    vecs = jnp.stack([v1[0], v2[0]], axis=0)              # (2, 9, DMAX)
    w1s = jnp.stack([v1[1], v2[1]], axis=0)               # (2, F, H)
    w2s = jnp.stack([v1[2], v2[2]], axis=0)               # (2, H, H)
    w3s = jnp.stack([v1[3], v2[3]], axis=0)               # (2, H, CPAD)

    flops = int(2 * G * 2 * BPAD * (EPAD * F + F * H + H * H + H * CPAD))
    transcendentals = int(2 * G * (F + 2 * H))            # rsqrt per BN feature
    bytes_accessed = int(4 * (sel.size + ef.size + vecs.size + w1s.size
                              + w2s.size + w3s.size + 2 * G * BPAD * CPAD))

    out = pl.pallas_call(
        _make_value_kernel(n_subs),
        out_shape=jax.ShapeDtypeStruct((2, G, BPAD, CPAD), jnp.float32),
        grid_spec=pltpu.PrefetchScalarGridSpec(
            num_scalar_prefetch=0,
            grid=(2,),                                    # heads only
            in_specs=[
                pl.BlockSpec((G, BPAD, EPAD), lambda h: (0, 0, 0)),   # shared
                pl.BlockSpec((None, EPAD, F), lambda h: (h, 0, 0)),
                pl.BlockSpec((None, 9, DMAX), lambda h: (h, 0, 0)),
                pl.BlockSpec((None, F, H), lambda h: (h, 0, 0)),
                pl.BlockSpec((None, H, H), lambda h: (h, 0, 0)),
                pl.BlockSpec((None, H, CPAD), lambda h: (h, 0, 0)),
            ],
            out_specs=pl.BlockSpec((None, G, BPAD, CPAD),
                                   lambda h: (h, 0, 0, 0)),
        ),
        compiler_params=pltpu.CompilerParams(
            dimension_semantics=("parallel",)),           # one head per TC on v7x
        cost_estimate=pl.CostEstimate(flops=flops,
                                      transcendentals=transcendentals,
                                      bytes_accessed=bytes_accessed),
    )(sel, ef, vecs, w1s, w2s, w3s)

    q1 = [out[0, i, :n_subs[i], :n_classes] for i in range(G)]
    q2 = [out[1, i, :n_subs[i], :n_classes] for i in range(G)]
    return q1, q2


# ----------------------------------------------------------------------------
# Stand-ins for sub-modules whose source was not provided
# ----------------------------------------------------------------------------
def qgcnn_standin(node_features, edge_index, actions):
    # TODO(synk): QGcnn definition not provided; stand-in = endpoint-mean * action.
    u, v = edge_index[0], edge_index[1]
    ef = 0.5 * (node_features[u] + node_features[v]) * actions   # (E, F)
    return ef, jnp.float32(0.0)


def global_edge_gcnn_standin(sub_edge_features, sg_edges):
    # TODO(synk): GlobalEdgeGcnn definition not provided; stand-in = identity with
    # zero side loss. Because it is the identity, the per-group gather that would
    # feed it is fused directly into the Pallas value-head kernel (as the
    # selection-matrix matmul); a real GlobalEdgeGcnn would run in between.
    del sg_edges
    return sub_edge_features, jnp.float32(0.0)


# ----------------------------------------------------------------------------
# Parameter construction (deterministic, synthetic)
# ----------------------------------------------------------------------------
def make_value_params(key, n_in_features, hl_factor, n_classes):
    H = hl_factor * 4
    ks = jax.random.split(key, 3)

    def lin(k, fan_in, fan_out):
        bound = 1.0 / jnp.sqrt(jnp.float32(fan_in))
        kw, kb = jax.random.split(k)
        w = jax.random.uniform(kw, (fan_in, fan_out), jnp.float32, -bound, bound)
        b = jax.random.uniform(kb, (1, fan_out), jnp.float32, -bound, bound)
        return w, b

    w1, b1 = lin(ks[0], n_in_features, H)
    w2, b2 = lin(ks[1], H, H)
    w3, b3 = lin(ks[2], H, n_classes)
    return dict(
        bn1_g=jnp.ones((1, n_in_features), jnp.float32),
        bn1_b=jnp.zeros((1, n_in_features), jnp.float32),
        w1=w1, b1=b1,
        bn2_g=jnp.ones((1, H), jnp.float32),
        bn2_b=jnp.zeros((1, H), jnp.float32),
        w2=w2, b2=b2,
        bn3_g=jnp.ones((1, H), jnp.float32),
        bn3_b=jnp.zeros((1, H), jnp.float32),
        w3=w3, b3=b3,
    )


# ----------------------------------------------------------------------------
# DoubleQValueNet.forward (structure mirrored from the PyTorch module)
# ----------------------------------------------------------------------------
def double_q_value_net_forward(params, s_subgraph, n_classes,
                               node_features, actions, edge_index, angles,
                               sub_graphs, sep_subgraphs, gt_edges, post_input):
    del angles, gt_edges, post_input  # consumed only by QGcnn (stand-in ignores them)

    actions = actions[:, None]  # actions.unsqueeze(-1)

    ef1, side_loss = qgcnn_standin(node_features, edge_index, actions)
    ef2, _sl = qgcnn_standin(node_features, edge_index, actions)
    side_loss = side_loss + _sl

    # GlobalEdgeGcnn stand-ins (identity): keep side-loss accumulation structure.
    for i in range(len(s_subgraph)):
        sep = sep_subgraphs[i]
        sg_edges = jnp.concatenate(
            [sep, jnp.stack([sep[1], sep[0]], axis=0)], axis=1)
        _u1, _sl1 = global_edge_gcnn_standin(ef1, sg_edges)
        _u2, _sl2 = global_edge_gcnn_standin(ef2, sg_edges)
        side_loss = side_loss + _sl1 + _sl2

    # Fused Pallas hot path: gather+mean (as matmul) + value MLP, both heads, all groups.
    q1_list, q2_list = fused_value_heads(
        ef1, ef2, sub_graphs, s_subgraph,
        params["value1"], params["value2"], n_classes)

    sg_edge_features1 = [jnp.squeeze(q) for q in q1_list]
    sg_edge_features2 = [jnp.squeeze(q) for q in q2_list]
    return sg_edge_features1, sg_edge_features2, side_loss / 4.0


# ----------------------------------------------------------------------------
# Pure-JAX reference for the value head (f32, PyTorch semantics)
# ----------------------------------------------------------------------------
def _value_head_ref(x, p):
    h = jnp.mean(x, axis=1)

    def bn(h, g, b):
        mu = jnp.mean(h, axis=0, keepdims=True)
        var = jnp.mean((h - mu) ** 2, axis=0, keepdims=True)
        return (h - mu) * jax.lax.rsqrt(var + 1e-5) * g + b

    def lrelu(h):
        return jnp.where(h >= 0.0, h, 0.01 * h)

    h = lrelu(bn(h, p["bn1_g"], p["bn1_b"])) @ p["w1"] + p["b1"]
    h = lrelu(bn(h, p["bn2_g"], p["bn2_b"])) @ p["w2"] + p["b2"]
    h = lrelu(bn(h, p["bn3_g"], p["bn3_b"])) @ p["w3"] + p["b3"]
    return h


# ----------------------------------------------------------------------------
if __name__ == "__main__":
    key = jax.random.PRNGKey(0)
    k_nf, k_act, k_p1, k_p2, k_sg1, k_sg2 = jax.random.split(key, 6)

    # Small synthetic shapes
    n_in_features = 32
    n_classes = 3
    hl_factor = 8
    s_subgraph = (4, 8)
    n_nodes = 16
    n_edges = 24

    node_features = jax.random.normal(k_nf, (n_nodes, n_in_features), jnp.float32)
    actions = jax.random.normal(k_act, (n_edges,), jnp.float32)
    edge_index = jnp.stack([
        jnp.arange(n_edges, dtype=jnp.int32) % n_nodes,
        (jnp.arange(n_edges, dtype=jnp.int32) * 5 + 3) % n_nodes,
    ], axis=0)
    angles = jnp.zeros((n_edges,), jnp.float32)
    gt_edges = jnp.zeros((n_edges,), jnp.float32)
    post_input = False

    # Per-subgraph-size index sets: 8 subgraphs of each size
    sub_graphs = [
        jax.random.randint(k_sg1, (8 * s_subgraph[0],), 0, n_edges),
        jax.random.randint(k_sg2, (8 * s_subgraph[1],), 0, n_edges),
    ]
    sep_subgraphs = [
        jnp.stack([jnp.arange(6, dtype=jnp.int32),
                   (jnp.arange(6, dtype=jnp.int32) + 1) % 6], axis=0),
        jnp.stack([jnp.arange(10, dtype=jnp.int32),
                   (jnp.arange(10, dtype=jnp.int32) + 2) % 10], axis=0),
    ]

    params = dict(
        value1=make_value_params(k_p1, n_in_features, hl_factor, n_classes),
        value2=make_value_params(k_p2, n_in_features, hl_factor, n_classes),
    )

    q1_list, q2_list, side_loss = double_q_value_net_forward(
        params, s_subgraph, n_classes,
        node_features, actions, edge_index, angles,
        sub_graphs, sep_subgraphs, gt_edges, post_input)

    for q in q1_list + q2_list:
        jax.block_until_ready(q)
    jax.block_until_ready(side_loss)

    # Sanity: output shapes (num_subgraphs, n_classes)
    assert q1_list[0].shape == (8, n_classes)
    assert q2_list[1].shape == (8, n_classes)

    # Reference check (all-f32 kernel -> tight tolerance).
    ef1_ref, _ = qgcnn_standin(node_features, edge_index, actions[:, None])
    ef2_ref, _ = qgcnn_standin(node_features, edge_index, actions[:, None])
    for i, sg in enumerate(s_subgraph):
        x1 = ef1_ref[sub_graphs[i]].reshape(-1, sg, n_in_features)
        x2 = ef2_ref[sub_graphs[i]].reshape(-1, sg, n_in_features)
        r1 = _value_head_ref(x1, params["value1"])
        r2 = _value_head_ref(x2, params["value2"])
        err = max(float(jnp.max(jnp.abs(q1_list[i] - r1))),
                  float(jnp.max(jnp.abs(q2_list[i] - r2))))
        assert err < 1e-3, f"group {i}: max abs err {err}"

    print("KERNEL_OK")
</pallas_src>

<mosaic_0001>
module attributes {stable_mosaic.version = 11 : i64} {
  func.func @kernel(%arg0: i32, %arg1: memref<2x8x24xf32, #tpu.memory_space<vmem>>, %arg2: memref<1x24x32xf32, #tpu.memory_space<vmem>>, %arg3: memref<1x9x128xf32, #tpu.memory_space<vmem>>, %arg4: memref<1x32x32xf32, #tpu.memory_space<vmem>>, %arg5: memref<1x32x32xf32, #tpu.memory_space<vmem>>, %arg6: memref<1x32x128xf32, #tpu.memory_space<vmem>>, %arg7: memref<1x2x8x128xf32, #tpu.memory_space<vmem>>) attributes {dimension_semantics = [#tpu.dimension_semantics<parallel>], iteration_bounds = array<i64: 2>, scalar_prefetch = 0 : i64, scratch_operands = 0 : i64, tpu.core_type = #tpu.core_type<tc>, window_params = [{pipeline_mode = #tpu.pipeline_mode<synchronous>, transform_indices = @transform_0, window_bounds = array<i64: 2, 8, 24>}, {transform_indices = @transform_1, window_bounds = array<i64: 1, 24, 32>}, {transform_indices = @transform_2, window_bounds = array<i64: 1, 9, 128>}, {transform_indices = @transform_3, window_bounds = array<i64: 1, 32, 32>}, {transform_indices = @transform_4, window_bounds = array<i64: 1, 32, 32>}, {transform_indices = @transform_5, window_bounds = array<i64: 1, 32, 128>}, {transform_indices = @transform_6, window_bounds = array<i64: 1, 2, 8, 128>}]} {
    %c0 = arith.constant 0 : index
    %c0_0 = arith.constant 0 : index
    %c0_1 = arith.constant 0 : index
    %0 = vector.load %arg2[%c0, %c0_0, %c0_1] : memref<1x24x32xf32, #tpu.memory_space<vmem>>, vector<1x24x32xf32>
    %1 = vector.shape_cast %0 : vector<1x24x32xf32> to vector<24x32xf32>
    %c0_2 = arith.constant 0 : index
    %c0_3 = arith.constant 0 : index
    %c0_4 = arith.constant 0 : index
    %2 = vector.load %arg4[%c0_2, %c0_3, %c0_4] : memref<1x32x32xf32, #tpu.memory_space<vmem>>, vector<1x32x32xf32>
    %3 = vector.shape_cast %2 : vector<1x32x32xf32> to vector<32x32xf32>
    %c0_5 = arith.constant 0 : index
    %c0_6 = arith.constant 0 : index
    %c0_7 = arith.constant 0 : index
    %4 = vector.load %arg5[%c0_5, %c0_6, %c0_7] : memref<1x32x32xf32, #tpu.memory_space<vmem>>, vector<1x32x32xf32>
    %5 = vector.shape_cast %4 : vector<1x32x32xf32> to vector<32x32xf32>
    %c0_8 = arith.constant 0 : index
    %c0_9 = arith.constant 0 : index
    %c0_10 = arith.constant 0 : index
    %6 = vector.load %arg6[%c0_8, %c0_9, %c0_10] : memref<1x32x128xf32, #tpu.memory_space<vmem>>, vector<1x32x128xf32>
    %7 = vector.shape_cast %6 : vector<1x32x128xf32> to vector<32x128xf32>
    %c0_11 = arith.constant 0 : index
    %c0_12 = arith.constant 0 : index
    %c0_13 = arith.constant 0 : index
    %8 = vector.load %arg3[%c0_11, %c0_12, %c0_13] : memref<1x9x128xf32, #tpu.memory_space<vmem>>, vector<1x1x32xf32>
    %9 = vector.shape_cast %8 : vector<1x1x32xf32> to vector<1x32xf32>
    %c0_14 = arith.constant 0 : index
    %c1 = arith.constant 1 : index
    %c0_15 = arith.constant 0 : index
    %10 = vector.load %arg3[%c0_14, %c1, %c0_15] : memref<1x9x128xf32, #tpu.memory_space<vmem>>, vector<1x1x32xf32>
    %11 = vector.shape_cast %10 : vector<1x1x32xf32> to vector<1x32xf32>
    %c0_16 = arith.constant 0 : index
    %c2 = arith.constant 2 : index
    %c0_17 = arith.constant 0 : index
    %12 = vector.load %arg3[%c0_16, %c2, %c0_17] : memref<1x9x128xf32, #tpu.memory_space<vmem>>, vector<1x1x32xf32>
    %13 = vector.shape_cast %12 : vector<1x1x32xf32> to vector<1x32xf32>
    %c0_18 = arith.constant 0 : index
    %c3 = arith.constant 3 : index
    %c0_19 = arith.constant 0 : index
    %14 = vector.load %arg3[%c0_18, %c3, %c0_19] : memref<1x9x128xf32, #tpu.memory_space<vmem>>, vector<1x1x32xf32>
    %15 = vector.shape_cast %14 : vector<1x1x32xf32> to vector<1x32xf32>
    %c0_20 = arith.constant 0 : index
    %c4 = arith.constant 4 : index
    %c0_21 = arith.constant 0 : index
    %16 = vector.load %arg3[%c0_20, %c4, %c0_21] : memref<1x9x128xf32, #tpu.memory_space<vmem>>, vector<1x1x32xf32>
    %17 = vector.shape_cast %16 : vector<1x1x32xf32> to vector<1x32xf32>
    %c0_22 = arith.constant 0 : index
    %c5 = arith.constant 5 : index
    %c0_23 = arith.constant 0 : index
    %18 = vector.load %arg3[%c0_22, %c5, %c0_23] : memref<1x9x128xf32, #tpu.memory_space<vmem>>, vector<1x1x32xf32>
    %19 = vector.shape_cast %18 : vector<1x1x32xf32> to vector<1x32xf32>
    %c0_24 = arith.constant 0 : index
    %c6 = arith.constant 6 : index
    %c0_25 = arith.constant 0 : index
    %20 = vector.load %arg3[%c0_24, %c6, %c0_25] : memref<1x9x128xf32, #tpu.memory_space<vmem>>, vector<1x1x32xf32>
    %21 = vector.shape_cast %20 : vector<1x1x32xf32> to vector<1x32xf32>
    %c0_26 = arith.constant 0 : index
    %c7 = arith.constant 7 : index
    %c0_27 = arith.constant 0 : index
    %22 = vector.load %arg3[%c0_26, %c7, %c0_27] : memref<1x9x128xf32, #tpu.memory_space<vmem>>, vector<1x1x32xf32>
    %23 = vector.shape_cast %22 : vector<1x1x32xf32> to vector<1x32xf32>
    %c0_28 = arith.constant 0 : index
    %c8 = arith.constant 8 : index
    %c0_29 = arith.constant 0 : index
    %24 = vector.load %arg3[%c0_28, %c8, %c0_29] : memref<1x9x128xf32, #tpu.memory_space<vmem>>, vector<1x1x128xf32>
    %25 = vector.shape_cast %24 : vector<1x1x128xf32> to vector<1x128xf32>
    %26 = tpu.iota {dimensions = array<i32: 0>} : vector<8x1xi32>
    %c8_i32 = arith.constant 8 : i32
    %27 = vector.broadcast %c8_i32 : i32 to vector<8x1xi32>
    %28 = arith.cmpi slt, %26, %27 : vector<8x1xi32>
    %29 = arith.extui %28 : vector<8x1xi1> to vector<8x1xi32>
    %30 = arith.sitofp %29 : vector<8x1xi32> to vector<8x1xf32>
    %c0_30 = arith.constant 0 : index
    %c0_31 = arith.constant 0 : index
    %c0_32 = arith.constant 0 : index
    %31 = vector.load %arg1[%c0_30, %c0_31, %c0_32] : memref<2x8x24xf32, #tpu.memory_space<vmem>>, vector<1x8x24xf32>
    %32 = vector.shape_cast %31 : vector<1x8x24xf32> to vector<8x24xf32>
    %cst = arith.constant dense<0.000000e+00> : vector<8x32xf32>
    %33 = tpu.matmul %32, %1, %cst {dimension_numbers = #tpu.dot_dimension_numbers<[1], [0], [0], [1], [0, 0, 1, 1], [], []>} : vector<8x24xf32>, vector<24x32xf32>, vector<8x32xf32> -> vector<8x32xf32>
    %34 = vector.broadcast %30 : vector<8x1xf32> to vector<8x32xf32>
    %35 = arith.mulf %33, %34 : vector<8x32xf32>
    %cst_33 = arith.constant dense<0.000000e+00> : vector<32xf32>
    %36 = vector.multi_reduction <add>, %35, %cst_33 [0] : vector<8x32xf32> to vector<32xf32>
    %37 = vector.shape_cast %36 : vector<32xf32> to vector<1x32xf32>
    %cst_34 = arith.constant 1.250000e-01 : f32
    %38 = vector.broadcast %cst_34 : f32 to vector<1x32xf32>
    %39 = arith.mulf %37, %38 : vector<1x32xf32>
    %40 = vector.broadcast %39 : vector<1x32xf32> to vector<8x32xf32>
    %41 = arith.subf %33, %40 : vector<8x32xf32>
    %42 = vector.broadcast %30 : vector<8x1xf32> to vector<8x32xf32>
    %43 = arith.mulf %41, %42 : vector<8x32xf32>
    %44 = arith.mulf %43, %43 : vector<8x32xf32>
    %cst_35 = arith.constant dense<0.000000e+00> : vector<32xf32>
    %45 = vector.multi_reduction <add>, %44, %cst_35 [0] : vector<8x32xf32> to vector<32xf32>
    %46 = vector.shape_cast %45 : vector<32xf32> to vector<1x32xf32>
    %cst_36 = arith.constant 1.250000e-01 : f32
    %47 = vector.broadcast %cst_36 : f32 to vector<1x32xf32>
    %48 = arith.mulf %46, %47 : vector<1x32xf32>
    %49 = vector.broadcast %39 : vector<1x32xf32> to vector<8x32xf32>
    %50 = arith.subf %33, %49 : vector<8x32xf32>
    %cst_37 = arith.constant 9.99999974E-6 : f32
    %51 = vector.broadcast %cst_37 : f32 to vector<1x32xf32>
    %52 = arith.addf %48, %51 : vector<1x32xf32>
    %53 = math.rsqrt %52 : vector<1x32xf32>
    %54 = vector.broadcast %53 : vector<1x32xf32> to vector<8x32xf32>
    %55 = arith.mulf %50, %54 : vector<8x32xf32>
    %56 = vector.broadcast %9 : vector<1x32xf32> to vector<8x32xf32>
    %57 = arith.mulf %55, %56 : vector<8x32xf32>
    %58 = vector.broadcast %11 : vector<1x32xf32> to vector<8x32xf32>
    %59 = arith.addf %57, %58 : vector<8x32xf32>
    %cst_38 = arith.constant 0.000000e+00 : f32
    %60 = vector.broadcast %cst_38 : f32 to vector<8x32xf32>
    %61 = arith.cmpf oge, %59, %60 : vector<8x32xf32>
    %cst_39 = arith.constant 0.00999999977 : f32
    %62 = vector.broadcast %cst_39 : f32 to vector<8x32xf32>
    %63 = arith.mulf %62, %59 : vector<8x32xf32>
    %64 = arith.select %61, %59, %63 : vector<8x32xi1>, vector<8x32xf32>
    %cst_40 = arith.constant dense<0.000000e+00> : vector<8x32xf32>
    %65 = tpu.matmul %64, %3, %cst_40 {dimension_numbers = #tpu.dot_dimension_numbers<[1], [0], [0], [1], [0, 0, 1, 1], [], []>} : vector<8x32xf32>, vector<32x32xf32>, vector<8x32xf32> -> vector<8x32xf32>
    %66 = vector.broadcast %21 : vector<1x32xf32> to vector<8x32xf32>
    %67 = arith.addf %65, %66 : vector<8x32xf32>
    %68 = vector.broadcast %30 : vector<8x1xf32> to vector<8x32xf32>
    %69 = arith.mulf %67, %68 : vector<8x32xf32>
    %cst_41 = arith.constant dense<0.000000e+00> : vector<32xf32>
    %70 = vector.multi_reduction <add>, %69, %cst_41 [0] : vector<8x32xf32> to vector<32xf32>
    %71 = vector.shape_cast %70 : vector<32xf32> to vector<1x32xf32>
    %cst_42 = arith.constant 1.250000e-01 : f32
    %72 = vector.broadcast %cst_42 : f32 to vector<1x32xf32>
    %73 = arith.mulf %71, %72 : vector<1x32xf32>
    %74 = vector.broadcast %73 : vector<1x32xf32> to vector<8x32xf32>
    %75 = arith.subf %67, %74 : vector<8x32xf32>
    %76 = vector.broadcast %30 : vector<8x1xf32> to vector<8x32xf32>
    %77 = arith.mulf %75, %76 : vector<8x32xf32>
    %78 = arith.mulf %77, %77 : vector<8x32xf32>
    %cst_43 = arith.constant dense<0.000000e+00> : vector<32xf32>
    %79 = vector.multi_reduction <add>, %78, %cst_43 [0] : vector<8x32xf32> to vector<32xf32>
    %80 = vector.shape_cast %79 : vector<32xf32> to vector<1x32xf32>
    %cst_44 = arith.constant 1.250000e-01 : f32
    %81 = vector.broadcast %cst_44 : f32 to vector<1x32xf32>
    %82 = arith.mulf %80, %81 : vector<1x32xf32>
    %83 = vector.broadcast %73 : vector<1x32xf32> to vector<8x32xf32>
    %84 = arith.subf %67, %83 : vector<8x32xf32>
    %cst_45 = arith.constant 9.99999974E-6 : f32
    %85 = vector.broadcast %cst_45 : f32 to vector<1x32xf32>
    %86 = arith.addf %82, %85 : vector<1x32xf32>
    %87 = math.rsqrt %86 : vector<1x32xf32>
    %88 = vector.broadcast %87 : vector<1x32xf32> to vector<8x32xf32>
    %89 = arith.mulf %84, %88 : vector<8x32xf32>
    %90 = vector.broadcast %13 : vector<1x32xf32> to vector<8x32xf32>
    %91 = arith.mulf %89, %90 : vector<8x32xf32>
    %92 = vector.broadcast %15 : vector<1x32xf32> to vector<8x32xf32>
    %93 = arith.addf %91, %92 : vector<8x32xf32>
    %cst_46 = arith.constant 0.000000e+00 : f32
    %94 = vector.broadcast %cst_46 : f32 to vector<8x32xf32>
    %95 = arith.cmpf oge, %93, %94 : vector<8x32xf32>
    %cst_47 = arith.constant 0.00999999977 : f32
    %96 = vector.broadcast %cst_47 : f32 to vector<8x32xf32>
    %97 = arith.mulf %96, %93 : vector<8x32xf32>
    %98 = arith.select %95, %93, %97 : vector<8x32xi1>, vector<8x32xf32>
    %cst_48 = arith.constant dense<0.000000e+00> : vector<8x32xf32>
    %99 = tpu.matmul %98, %5, %cst_48 {dimension_numbers = #tpu.dot_dimension_numbers<[1], [0], [0], [1], [0, 0, 1, 1], [], []>} : vector<8x32xf32>, vector<32x32xf32>, vector<8x32xf32> -> vector<8x32xf32>
    %100 = vector.broadcast %23 : vector<1x32xf32> to vector<8x32xf32>
    %101 = arith.addf %99, %100 : vector<8x32xf32>
    %102 = vector.broadcast %30 : vector<8x1xf32> to vector<8x32xf32>
    %103 = arith.mulf %101, %102 : vector<8x32xf32>
    %cst_49 = arith.constant dense<0.000000e+00> : vector<32xf32>
    %104 = vector.multi_reduction <add>, %103, %cst_49 [0] : vector<8x32xf32> to vector<32xf32>
    %105 = vector.shape_cast %104 : vector<32xf32> to vector<1x32xf32>
    %cst_50 = arith.constant 1.250000e-01 : f32
    %106 = vector.broadcast %cst_50 : f32 to vector<1x32xf32>
    %107 = arith.mulf %105, %106 : vector<1x32xf32>
    %108 = vector.broadcast %107 : vector<1x32xf32> to vector<8x32xf32>
    %109 = arith.subf %101, %108 : vector<8x32xf32>
    %110 = vector.broadcast %30 : vector<8x1xf32> to vector<8x32xf32>
    %111 = arith.mulf %109, %110 : vector<8x32xf32>
    %112 = arith.mulf %111, %111 : vector<8x32xf32>
    %cst_51 = arith.constant dense<0.000000e+00> : vector<32xf32>
    %113 = vector.multi_reduction <add>, %112, %cst_51 [0] : vector<8x32xf32> to vector<32xf32>
    %114 = vector.shape_cast %113 : vector<32xf32> to vector<1x32xf32>
    %cst_52 = arith.constant 1.250000e-01 : f32
    %115 = vector.broadcast %cst_52 : f32 to vector<1x32xf32>
    %116 = arith.mulf %114, %115 : vector<1x32xf32>
    %117 = vector.broadcast %107 : vector<1x32xf32> to vector<8x32xf32>
    %118 = arith.subf %101, %117 : vector<8x32xf32>
    %cst_53 = arith.constant 9.99999974E-6 : f32
    %119 = vector.broadcast %cst_53 : f32 to vector<1x32xf32>
    %120 = arith.addf %116, %119 : vector<1x32xf32>
    %121 = math.rsqrt %120 : vector<1x32xf32>
    %122 = vector.broadcast %121 : vector<1x32xf32> to vector<8x32xf32>
    %123 = arith.mulf %118, %122 : vector<8x32xf32>
    %124 = vector.broadcast %17 : vector<1x32xf32> to vector<8x32xf32>
    %125 = arith.mulf %123, %124 : vector<8x32xf32>
    %126 = vector.broadcast %19 : vector<1x32xf32> to vector<8x32xf32>
    %127 = arith.addf %125, %126 : vector<8x32xf32>
    %cst_54 = arith.constant 0.000000e+00 : f32
    %128 = vector.broadcast %cst_54 : f32 to vector<8x32xf32>
    %129 = arith.cmpf oge, %127, %128 : vector<8x32xf32>
    %cst_55 = arith.constant 0.00999999977 : f32
    %130 = vector.broadcast %cst_55 : f32 to vector<8x32xf32>
    %131 = arith.mulf %130, %127 : vector<8x32xf32>
    %132 = arith.select %129, %127, %131 : vector<8x32xi1>, vector<8x32xf32>
    %cst_56 = arith.constant dense<0.000000e+00> : vector<8x128xf32>
    %133 = tpu.matmul %132, %7, %cst_56 {dimension_numbers = #tpu.dot_dimension_numbers<[1], [0], [0], [1], [0, 0, 1, 1], [], []>} : vector<8x32xf32>, vector<32x128xf32>, vector<8x128xf32> -> vector<8x128xf32>
    %134 = vector.broadcast %25 : vector<1x128xf32> to vector<8x128xf32>
    %135 = arith.addf %133, %134 : vector<8x128xf32>
    %c0_57 = arith.constant 0 : index
    %c0_58 = arith.constant 0 : index
    %c0_59 = arith.constant 0 : index
    %c0_60 = arith.constant 0 : index
    %136 = vector.load %arg7[%c0_57, %c0_58, %c0_59, %c0_60] : memref<1x2x8x128xf32, #tpu.memory_space<vmem>>, vector<1x1x8x128xf32>
    %137 = vector.shape_cast %136 : vector<1x1x8x128xf32> to vector<8x128xf32>
    %138 = vector.shape_cast %135 : vector<8x128xf32> to vector<1x1x8x128xf32>
    tpu.vector_store %arg7[%c0_57, %c0_58, %c0_59, %c0_60], %138 {strides = array<i32>} : memref<1x2x8x128xf32, #tpu.memory_space<vmem>>, vector<1x1x8x128xf32>,
    %c8_i32_61 = arith.constant 8 : i32
    %139 = vector.broadcast %c8_i32_61 : i32 to vector<8x1xi32>
    %140 = arith.cmpi slt, %26, %139 : vector<8x1xi32>
    %141 = arith.extui %140 : vector<8x1xi1> to vector<8x1xi32>
    %142 = arith.sitofp %141 : vector<8x1xi32> to vector<8x1xf32>
    %c1_62 = arith.constant 1 : index
    %c0_63 = arith.constant 0 : index
    %c0_64 = arith.constant 0 : index
    %143 = vector.load %arg1[%c1_62, %c0_63, %c0_64] : memref<2x8x24xf32, #tpu.memory_space<vmem>>, vector<1x8x24xf32>
    %144 = vector.shape_cast %143 : vector<1x8x24xf32> to vector<8x24xf32>
    %cst_65 = arith.constant dense<0.000000e+00> : vector<8x32xf32>
    %145 = tpu.matmul %144, %1, %cst_65 {dimension_numbers = #tpu.dot_dimension_numbers<[1], [0], [0], [1], [0, 0, 1, 1], [], []>} : vector<8x24xf32>, vector<24x32xf32>, vector<8x32xf32> -> vector<8x32xf32>
    %146 = vector.broadcast %142 : vector<8x1xf32> to vector<8x32xf32>
    %147 = arith.mulf %145, %146 : vector<8x32xf32>
    %cst_66 = arith.constant dense<0.000000e+00> : vector<32xf32>
    %148 = vector.multi_reduction <add>, %147, %cst_66 [0] : vector<8x32xf32> to vector<32xf32>
    %149 = vector.shape_cast %148 : vector<32xf32> to vector<1x32xf32>
    %cst_67 = arith.constant 1.250000e-01 : f32
    %150 = vector.broadcast %cst_67 : f32 to vector<1x32xf32>
    %151 = arith.mulf %149, %150 : vector<1x32xf32>
    %152 = vector.broadcast %151 : vector<1x32xf32> to vector<8x32xf32>
    %153 = arith.subf %145, %152 : vector<8x32xf32>
    %154 = vector.broadcast %142 : vector<8x1xf32> to vector<8x32xf32>
    %155 = arith.mulf %153, %154 : vector<8x32xf32>
    %156 = arith.mulf %155, %155 : vector<8x32xf32>
    %cst_68 = arith.constant dense<0.000000e+00> : vector<32xf32>
    %157 = vector.multi_reduction <add>, %156, %cst_68 [0] : vector<8x32xf32> to vector<32xf32>
    %158 = vector.shape_cast %157 : vector<32xf32> to vector<1x32xf32>
    %cst_69 = arith.constant 1.250000e-01 : f32
    %159 = vector.broadcast %cst_69 : f32 to vector<1x32xf32>
    %160 = arith.mulf %158, %159 : vector<1x32xf32>
    %161 = vector.broadcast %151 : vector<1x32xf32> to vector<8x32xf32>
    %162 = arith.subf %145, %161 : vector<8x32xf32>
    %cst_70 = arith.constant 9.99999974E-6 : f32
    %163 = vector.broadcast %cst_70 : f32 to vector<1x32xf32>
    %164 = arith.addf %160, %163 : vector<1x32xf32>
    %165 = math.rsqrt %164 : vector<1x32xf32>
    %166 = vector.broadcast %165 : vector<1x32xf32> to vector<8x32xf32>
    %167 = arith.mulf %162, %166 : vector<8x32xf32>
    %168 = vector.broadcast %9 : vector<1x32xf32> to vector<8x32xf32>
    %169 = arith.mulf %167, %168 : vector<8x32xf32>
    %170 = vector.broadcast %11 : vector<1x32xf32> to vector<8x32xf32>
    %171 = arith.addf %169, %170 : vector<8x32xf32>
    %cst_71 = arith.constant 0.000000e+00 : f32
    %172 = vector.broadcast %cst_71 : f32 to vector<8x32xf32>
    %173 = arith.cmpf oge, %171, %172 : vector<8x32xf32>
    %cst_72 = arith.constant 0.00999999977 : f32
    %174 = vector.broadcast %cst_72 : f32 to vector<8x32xf32>
    %175 = arith.mulf %174, %171 : vector<8x32xf32>
    %176 = arith.select %173, %171, %175 : vector<8x32xi1>, vector<8x32xf32>
    %cst_73 = arith.constant dense<0.000000e+00> : vector<8x32xf32>
    %177 = tpu.matmul %176, %3, %cst_73 {dimension_numbers = #tpu.dot_dimension_numbers<[1], [0], [0], [1], [0, 0, 1, 1], [], []>} : vector<8x32xf32>, vector<32x32xf32>, vector<8x32xf32> -> vector<8x32xf32>
    %178 = vector.broadcast %21 : vector<1x32xf32> to vector<8x32xf32>
    %179 = arith.addf %177, %178 : vector<8x32xf32>
    %180 = vector.broadcast %142 : vector<8x1xf32> to vector<8x32xf32>
    %181 = arith.mulf %179, %180 : vector<8x32xf32>
    %cst_74 = arith.constant dense<0.000000e+00> : vector<32xf32>
    %182 = vector.multi_reduction <add>, %181, %cst_74 [0] : vector<8x32xf32> to vector<32xf32>
    %183 = vector.shape_cast %182 : vector<32xf32> to vector<1x32xf32>
    %cst_75 = arith.constant 1.250000e-01 : f32
    %184 = vector.broadcast %cst_75 : f32 to vector<1x32xf32>
    %185 = arith.mulf %183, %184 : vector<1x32xf32>
    %186 = vector.broadcast %185 : vector<1x32xf32> to vector<8x32xf32>
    %187 = arith.subf %179, %186 : vector<8x32xf32>
    %188 = vector.broadcast %142 : vector<8x1xf32> to vector<8x32xf32>
    %189 = arith.mulf %187, %188 : vector<8x32xf32>
    %190 = arith.mulf %189, %189 : vector<8x32xf32>
    %cst_76 = arith.constant dense<0.000000e+00> : vector<32xf32>
    %191 = vector.multi_reduction <add>, %190, %cst_76 [0] : vector<8x32xf32> to vector<32xf32>
    %192 = vector.shape_cast %191 : vector<32xf32> to vector<1x32xf32>
    %cst_77 = arith.constant 1.250000e-01 : f32
    %193 = vector.broadcast %cst_77 : f32 to vector<1x32xf32>
    %194 = arith.mulf %192, %193 : vector<1x32xf32>
    %195 = vector.broadcast %185 : vector<1x32xf32> to vector<8x32xf32>
    %196 = arith.subf %179, %195 : vector<8x32xf32>
    %cst_78 = arith.constant 9.99999974E-6 : f32
    %197 = vector.broadcast %cst_78 : f32 to vector<1x32xf32>
    %198 = arith.addf %194, %197 : vector<1x32xf32>
    %199 = math.rsqrt %198 : vector<1x32xf32>
    %200 = vector.broadcast %199 : vector<1x32xf32> to vector<8x32xf32>
    %201 = arith.mulf %196, %200 : vector<8x32xf32>
    %202 = vector.broadcast %13 : vector<1x32xf32> to vector<8x32xf32>
    %203 = arith.mulf %201, %202 : vector<8x32xf32>
    %204 = vector.broadcast %15 : vector<1x32xf32> to vector<8x32xf32>
    %205 = arith.addf %203, %204 : vector<8x32xf32>
    %cst_79 = arith.constant 0.000000e+00 : f32
    %206 = vector.broadcast %cst_79 : f32 to vector<8x32xf32>
    %207 = arith.cmpf oge, %205, %206 : vector<8x32xf32>
    %cst_80 = arith.constant 0.00999999977 : f32
    %208 = vector.broadcast %cst_80 : f32 to vector<8x32xf32>
    %209 = arith.mulf %208, %205 : vector<8x32xf32>
    %210 = arith.select %207, %205, %209 : vector<8x32xi1>, vector<8x32xf32>
    %cst_81 = arith.constant dense<0.000000e+00> : vector<8x32xf32>
    %211 = tpu.matmul %210, %5, %cst_81 {dimension_numbers = #tpu.dot_dimension_numbers<[1], [0], [0], [1], [0, 0, 1, 1], [], []>} : vector<8x32xf32>, vector<32x32xf32>, vector<8x32xf32> -> vector<8x32xf32>
    %212 = vector.broadcast %23 : vector<1x32xf32> to vector<8x32xf32>
    %213 = arith.addf %211, %212 : vector<8x32xf32>
    %214 = vector.broadcast %142 : vector<8x1xf32> to vector<8x32xf32>
    %215 = arith.mulf %213, %214 : vector<8x32xf32>
    %cst_82 = arith.constant dense<0.000000e+00> : vector<32xf32>
    %216 = vector.multi_reduction <add>, %215, %cst_82 [0] : vector<8x32xf32> to vector<32xf32>
    %217 = vector.shape_cast %216 : vector<32xf32> to vector<1x32xf32>
    %cst_83 = arith.constant 1.250000e-01 : f32
    %218 = vector.broadcast %cst_83 : f32 to vector<1x32xf32>
    %219 = arith.mulf %217, %218 : vector<1x32xf32>
    %220 = vector.broadcast %219 : vector<1x32xf32> to vector<8x32xf32>
    %221 = arith.subf %213, %220 : vector<8x32xf32>
    %222 = vector.broadcast %142 : vector<8x1xf32> to vector<8x32xf32>
    %223 = arith.mulf %221, %222 : vector<8x32xf32>
    %224 = arith.mulf %223, %223 : vector<8x32xf32>
    %cst_84 = arith.constant dense<0.000000e+00> : vector<32xf32>
    %225 = vector.multi_reduction <add>, %224, %cst_84 [0] : vector<8x32xf32> to vector<32xf32>
    %226 = vector.shape_cast %225 : vector<32xf32> to vector<1x32xf32>
    %cst_85 = arith.constant 1.250000e-01 : f32
    %227 = vector.broadcast %cst_85 : f32 to vector<1x32xf32>
    %228 = arith.mulf %226, %227 : vector<1x32xf32>
    %229 = vector.broadcast %219 : vector<1x32xf32> to vector<8x32xf32>
    %230 = arith.subf %213, %229 : vector<8x32xf32>
    %cst_86 = arith.constant 9.99999974E-6 : f32
    %231 = vector.broadcast %cst_86 : f32 to vector<1x32xf32>
    %232 = arith.addf %228, %231 : vector<1x32xf32>
    %233 = math.rsqrt %232 : vector<1x32xf32>
    %234 = vector.broadcast %233 : vector<1x32xf32> to vector<8x32xf32>
    %235 = arith.mulf %230, %234 : vector<8x32xf32>
    %236 = vector.broadcast %17 : vector<1x32xf32> to vector<8x32xf32>
    %237 = arith.mulf %235, %236 : vector<8x32xf32>
    %238 = vector.broadcast %19 : vector<1x32xf32> to vector<8x32xf32>
    %239 = arith.addf %237, %238 : vector<8x32xf32>
    %cst_87 = arith.constant 0.000000e+00 : f32
    %240 = vector.broadcast %cst_87 : f32 to vector<8x32xf32>
    %241 = arith.cmpf oge, %239, %240 : vector<8x32xf32>
    %cst_88 = arith.constant 0.00999999977 : f32
    %242 = vector.broadcast %cst_88 : f32 to vector<8x32xf32>
    %243 = arith.mulf %242, %239 : vector<8x32xf32>
    %244 = arith.select %241, %239, %243 : vector<8x32xi1>, vector<8x32xf32>
    %cst_89 = arith.constant dense<0.000000e+00> : vector<8x128xf32>
    %245 = tpu.matmul %244, %7, %cst_89 {dimension_numbers = #tpu.dot_dimension_numbers<[1], [0], [0], [1], [0, 0, 1, 1], [], []>} : vector<8x32xf32>, vector<32x128xf32>, vector<8x128xf32> -> vector<8x128xf32>
    %246 = vector.broadcast %25 : vector<1x128xf32> to vector<8x128xf32>
    %247 = arith.addf %245, %246 : vector<8x128xf32>
    %c0_90 = arith.constant 0 : index
    %c1_91 = arith.constant 1 : index
    %c0_92 = arith.constant 0 : index
    %c0_93 = arith.constant 0 : index
    %248 = vector.load %arg7[%c0_90, %c1_91, %c0_92, %c0_93] : memref<1x2x8x128xf32, #tpu.memory_space<vmem>>, vector<1x1x8x128xf32>
    %249 = vector.shape_cast %248 : vector<1x1x8x128xf32> to vector<8x128xf32>
    %250 = vector.shape_cast %247 : vector<8x128xf32> to vector<1x1x8x128xf32>
    tpu.vector_store %arg7[%c0_90, %c1_91, %c0_92, %c0_93], %250 {strides = array<i32>} : memref<1x2x8x128xf32, #tpu.memory_space<vmem>>, vector<1x1x8x128xf32>,
    return
  }
  func.func @transform_0(%arg0: i32) -> (i32, i32, i32) {
    %c0_i32 = arith.constant 0 : i32
    %c0_i32_0 = arith.constant 0 : i32
    %c0_i32_1 = arith.constant 0 : i32
    %c0_i32_2 = arith.constant 0 : i32
    return %c0_i32, %c0_i32_0, %c0_i32_1 : i32, i32, i32
  }
  func.func @transform_1(%arg0: i32) -> (i32, i32, i32) {
    %c0_i32 = arith.constant 0 : i32
    %c0_i32_0 = arith.constant 0 : i32
    %c0_i32_1 = arith.constant 0 : i32
    return %arg0, %c0_i32, %c0_i32_0 : i32, i32, i32
  }
  func.func @transform_2(%arg0: i32) -> (i32, i32, i32) {
    %c0_i32 = arith.constant 0 : i32
    %c0_i32_0 = arith.constant 0 : i32
    %c0_i32_1 = arith.constant 0 : i32
    return %arg0, %c0_i32, %c0_i32_0 : i32, i32, i32
  }
  func.func @transform_3(%arg0: i32) -> (i32, i32, i32) {
    %c0_i32 = arith.constant 0 : i32
    %c0_i32_0 = arith.constant 0 : i32
    %c0_i32_1 = arith.constant 0 : i32
    return %arg0, %c0_i32, %c0_i32_0 : i32, i32, i32
  }
  func.func @transform_4(%arg0: i32) -> (i32, i32, i32) {
    %c0_i32 = arith.constant 0 : i32
    %c0_i32_0 = arith.constant 0 : i32
    %c0_i32_1 = arith.constant 0 : i32
    return %arg0, %c0_i32, %c0_i32_0 : i32, i32, i32
  }
  func.func @transform_5(%arg0: i32) -> (i32, i32, i32) {
    %c0_i32 = arith.constant 0 : i32
    %c0_i32_0 = arith.constant 0 : i32
    %c0_i32_1 = arith.constant 0 : i32
    return %arg0, %c0_i32, %c0_i32_0 : i32, i32, i32
  }
  func.func @transform_6(%arg0: i32) -> (i32, i32, i32, i32) {
    %c0_i32 = arith.constant 0 : i32
    %c0_i32_0 = arith.constant 0 : i32
    %c0_i32_1 = arith.constant 0 : i32
    %c0_i32_2 = arith.constant 0 : i32
    return %arg0, %c0_i32, %c0_i32_0, %c0_i32_1 : i32, i32, i32, i32
  }
}

</mosaic_0001>

<llo_original>
// kernel: tpu_custom_call.1
$region0: #{tpu_custom_call.1}
  #allocation0 [shape = 'u32[]', space=smem, size = 0x4, offset = 0x4, fixed_abs, tag = 'smem constant byte address 0x4 - core index']
  #allocation1 [shape = 'u32[144,128]{1,0:T(1,128)}', space=vmem, size = 0x12000, scoped, tag = 'internal scratch']
  %s0 = inlined_call_operand.hbm [shape: f32[2,8,24], index: 0, kind: input, shape index: {}]
  %s1 = inlined_call_operand.vmem [shape: f32[2,24,32], index: 1, kind: input, shape index: {}]
  %s2 = inlined_call_operand.vmem [shape: f32[2,9,128], index: 2, kind: input, shape index: {}]
  %s3 = inlined_call_operand.hbm [shape: f32[2,32,32], index: 3, kind: input, shape index: {}]
  %s4 = inlined_call_operand.hbm [shape: f32[2,32,32], index: 4, kind: input, shape index: {}]
  %s5 = inlined_call_operand.hbm [shape: f32[2,32,128], index: 5, kind: input, shape index: {}]
  %s6 = inlined_call_operand.hbm [shape: f32[2,2,8,128], index: 6, kind: output, shape index: {}]
  %s7 = sld [smem:[#allocation0]]
  $region73: #{tpu_custom_call.1} parent=0
    _
  %s9 = ssub.s32 1, %s7
  %s10 = scalar_select 0, %s9, %s7
  $region1: #{tpu_custom_call.1} parent=0
    #allocation2 [shape = 'u8[8192]{0}', space=vmem, size = 0x2000, scoped, tag = 'input window, operand 0, single buffered']
    #allocation3 [shape = 's32[2]{0}', space=sflag, size = 0x8, scoped, tag = 'scoped memory for tpu_custom_call.1']
    #allocation4 [shape = 's32[2]{0}', space=sflag, size = 0x8, scoped, tag = 'scoped memory for tpu_custom_call.1']
    #allocation5 [shape = 'u8[32768]{0}', space=vmem, size = 0x8000, scoped, tag = 'input window, operand 3']
    #allocation6 [shape = 's32[2]{0}', space=sflag, size = 0x8, scoped, tag = 'scoped memory for tpu_custom_call.1']
    #allocation7 [shape = 'u8[32768]{0}', space=vmem, size = 0x8000, scoped, tag = 'input window, operand 4']
    #allocation8 [shape = 'u8[32768]{0}', space=vmem, size = 0x8000, scoped, tag = 'input window, operand 5']
    #allocation9 [shape = 's32[2]{0}', space=sflag, size = 0x8, scoped, tag = 'scoped memory for tpu_custom_call.1']
    #allocation10 [shape = 'u8[16384]{0}', space=vmem, size = 0x4000, scoped, tag = 'output window, operand 0']
    %11 = vsyncpa [#allocation3], 0
    %12 = vsyncpa [#allocation6], 0
    %s13 = scalar_lea.sflag [#allocation6], 1
    %14 = vsyncpa %s13, 0
    %15 = vsyncpa [#allocation9], 0
    %s16 = scalar_lea.sflag [#allocation9], 1
    %17 = vsyncpa %s16, 0
    %18 = vsyncpa [#allocation4], 0
    %s19 = scalar_lea.sflag [#allocation4], 1
    %20 = vsyncpa %s19, 0
    loop: start=0, step=1, limit=4
    $region2: #{tpu_custom_call.1} parent=1 // loop_pre_header
      _
    $region3: #{tpu_custom_call.1} parent=1 // loop_header
      %s22 = sphi 0, %s26
      %p23 = scmp.ge.s32.totalorder %s22, 4
      %s30 = sphi 0, %s30
      %s32 = sphi 0, %s30
      %s33 = sphi 0, %s32
      %s47 = sphi 0, %s33
      %s53 = sphi 0, %s55
      %s56 = sphi 0, %s53
      %s57 = sphi 0, %s56
      %s73 = sphi 0, %s57
      %s79 = sphi 0, %s81
      %s82 = sphi 0, %s79
      %s83 = sphi 0, %s82
      %s99 = sphi 0, %s83
      %s105 = sphi 0, %s107
      %s108 = sphi 0, %s105
      %s109 = sphi 0, %s108
      %s125 = sphi 0, %s109
      %s131 = sphi 0, %s133
      %s134 = sphi 0, %s131
      %s135 = sphi 0, %s134
      %s151 = sphi 0, %s135
      %s157 = sphi 0, %s159
      %s160 = sphi 0, %s157
      %s161 = sphi 0, %s160
      %s177 = sphi 0, %s161
      %s183 = sphi 0, %s185
      %s186 = sphi 0, %s183
      %s187 = sphi 0, %s186
      %s203 = sphi 0, %s187
    $region4: #{tpu_custom_call.1} parent=1 // loop_header_branch
      %25 = sbr.rel (%p23) target = $region8
    $region5: #{tpu_custom_call.1} parent=1 // loop_body
      %s27 = ssub.s32 %s22, 1
      %s28 = ssub.s32 %s22, 2
      %s29 = sadd.s32 %s22, 1
      %s31 = sadd.s32 %s30, 1
      %p34 = scmp.eq.s32.totalorder %s22, 1
      %p35 = scmp.ne.s32.totalorder %s30, %s32
      %p36 = scmp.eq.s32.totalorder %s22, 0
      %p37 = por %p35, %p36
      %p38 = scmp.ne.s32.totalorder %s30, %s32
      %p39 = scmp.eq.s32.totalorder %s27, 1
      %p40 = por %p38, %p39
      %p41 = scmp.ne.s32.totalorder %s32, %s33
      %p42 = scmp.eq.s32.totalorder %s27, 0
      %p43 = por %p41, %p42
      %p44 = scmp.ne.s32.totalorder %s32, %s33
      %p45 = scmp.eq.s32.totalorder %s28, 1
      %p46 = por %p44, %p45
      %p48 = scmp.ne.s32.totalorder %s33, %s47
      %p49 = scmp.eq.s32.totalorder %s28, 0
      %p50 = por %p48, %p49
      %s51 = ssub.s32 %s22, %s29
      %p52 = scmp.eq.s32.totalorder %s51, 0
      %s54 = sadd.s32 %s53, 1
      %s55 = scalar_select %p52, %s53, %s54
      %p58 = pneg %p52
      %p59 = scmp.eq.s32.totalorder %s22, 1
      %p60 = por %p58, %p59
      %p61 = scmp.ne.s32.totalorder %s53, %s56
      %p62 = scmp.eq.s32.totalorder %s22, 0
      %p63 = por %p61, %p62
      %p64 = scmp.ne.s32.totalorder %s53, %s56
      %p65 = scmp.eq.s32.totalorder %s27, 1
      %p66 = por %p64, %p65
      %p67 = scmp.ne.s32.totalorder %s56, %s57
      %p68 = scmp.eq.s32.totalorder %s27, 0
      %p69 = por %p67, %p68
      %p70 = scmp.ne.s32.totalorder %s56, %s57
      %p71 = scmp.eq.s32.totalorder %s28, 1
      %p72 = por %p70, %p71
      %p74 = scmp.ne.s32.totalorder %s57, %s73
      %p75 = scmp.eq.s32.totalorder %s28, 0
      %p76 = por %p74, %p75
      %s77 = ssub.s32 %s22, %s29
      %p78 = scmp.eq.s32.totalorder %s77, 0
      %s80 = sadd.s32 %s79, 1
      %s81 = scalar_select %p78, %s79, %s80
      %p84 = pneg %p78
      %p85 = scmp.eq.s32.totalorder %s22, 1
      %p86 = por %p84, %p85
      %p87 = scmp.ne.s32.totalorder %s79, %s82
      %p88 = scmp.eq.s32.totalorder %s22, 0
      %p89 = por %p87, %p88
      %p90 = scmp.ne.s32.totalorder %s79, %s82
      %p91 = scmp.eq.s32.totalorder %s27, 1
      %p92 = por %p90, %p91
      %p93 = scmp.ne.s32.totalorder %s82, %s83
      %p94 = scmp.eq.s32.totalorder %s27, 0
      %p95 = por %p93, %p94
      %p96 = scmp.ne.s32.totalorder %s82, %s83
      %p97 = scmp.eq.s32.totalorder %s28, 1
      %p98 = por %p96, %p97
      %p100 = scmp.ne.s32.totalorder %s83, %s99
      %p101 = scmp.eq.s32.totalorder %s28, 0
      %p102 = por %p100, %p101
      %s103 = ssub.s32 %s22, %s29
      %p104 = scmp.eq.s32.totalorder %s103, 0
      %s106 = sadd.s32 %s105, 1
      %s107 = scalar_select %p104, %s105, %s106
      %p110 = pneg %p104
      %p111 = scmp.eq.s32.totalorder %s22, 1
      %p112 = por %p110, %p111
      %p113 = scmp.ne.s32.totalorder %s105, %s108
      %p114 = scmp.eq.s32.totalorder %s22, 0
      %p115 = por %p113, %p114
      %p116 = scmp.ne.s32.totalorder %s105, %s108
      %p117 = scmp.eq.s32.totalorder %s27, 1
      %p118 = por %p116, %p117
      %p119 = scmp.ne.s32.totalorder %s108, %s109
      %p120 = scmp.eq.s32.totalorder %s27, 0
      %p121 = por %p119, %p120
      %p122 = scmp.ne.s32.totalorder %s108, %s109
      %p123 = scmp.eq.s32.totalorder %s28, 1
      %p124 = por %p122, %p123
      %p126 = scmp.ne.s32.totalorder %s109, %s125
      %p127 = scmp.eq.s32.totalorder %s28, 0
      %p128 = por %p126, %p127
      %s129 = ssub.s32 %s22, %s29
      %p130 = scmp.eq.s32.totalorder %s129, 0
      %s132 = sadd.s32 %s131, 1
      %s133 = scalar_select %p130, %s131, %s132
      %p136 = pneg %p130
      %p137 = scmp.eq.s32.totalorder %s22, 1
      %p138 = por %p136, %p137
      %p139 = scmp.ne.s32.totalorder %s131, %s134
      %p140 = scmp.eq.s32.totalorder %s22, 0
      %p141 = por %p139, %p140
      %p142 = scmp.ne.s32.totalorder %s131, %s134
      %p143 = scmp.eq.s32.totalorder %s27, 1
      %p144 = por %p142, %p143
      %p145 = scmp.ne.s32.totalorder %s134, %s135
      %p146 = scmp.eq.s32.totalorder %s27, 0
      %p147 = por %p145, %p146
      %p148 = scmp.ne.s32.totalorder %s134, %s135
      %p149 = scmp.eq.s32.totalorder %s28, 1
      %p150 = por %p148, %p149
      %p152 = scmp.ne.s32.totalorder %s135, %s151
      %p153 = scmp.eq.s32.totalorder %s28, 0
      %p154 = por %p152, %p153
      %s155 = ssub.s32 %s22, %s29
      %p156 = scmp.eq.s32.totalorder %s155, 0
      %s158 = sadd.s32 %s157, 1
      %s159 = scalar_select %p156, %s157, %s158
      %p162 = pneg %p156
      %p163 = scmp.eq.s32.totalorder %s22, 1
      %p164 = por %p162, %p163
      %p165 = scmp.ne.s32.totalorder %s157, %s160
      %p166 = scmp.eq.s32.totalorder %s22, 0
      %p167 = por %p165, %p166
      %p168 = scmp.ne.s32.totalorder %s157, %s160
      %p169 = scmp.eq.s32.totalorder %s27, 1
      %p170 = por %p168, %p169
      %p171 = scmp.ne.s32.totalorder %s160, %s161
      %p172 = scmp.eq.s32.totalorder %s27, 0
      %p173 = por %p171, %p172
      %p174 = scmp.ne.s32.totalorder %s160, %s161
      %p175 = scmp.eq.s32.totalorder %s28, 1
      %p176 = por %p174, %p175
      %p178 = scmp.ne.s32.totalorder %s161, %s177
      %p179 = scmp.eq.s32.totalorder %s28, 0
      %p180 = por %p178, %p179
      %s181 = ssub.s32 %s22, %s29
      %p182 = scmp.eq.s32.totalorder %s181, 0
      %s184 = sadd.s32 %s183, 1
      %s185 = scalar_select %p182, %s183, %s184
      %p188 = pneg %p182
      %p189 = scmp.eq.s32.totalorder %s22, 1
      %p190 = por %p188, %p189
      %p191 = scmp.ne.s32.totalorder %s183, %s186
      %p192 = scmp.eq.s32.totalorder %s22, 0
      %p193 = por %p191, %p192
      %p194 = scmp.ne.s32.totalorder %s183, %s186
      %p195 = scmp.eq.s32.totalorder %s27, 1
      %p196 = por %p194, %p195
      %p197 = scmp.ne.s32.totalorder %s186, %s187
      %p198 = scmp.eq.s32.totalorder %s27, 0
      %p199 = por %p197, %p198
      %p200 = scmp.ne.s32.totalorder %s186, %s187
      %p201 = scmp.eq.s32.totalorder %s28, 1
      %p202 = por %p200, %p201
      %p204 = scmp.ne.s32.totalorder %s187, %s203
      %p205 = scmp.eq.s32.totalorder %s28, 0
      %p206 = por %p204, %p205
      %p207 = scmp.le.s32.totalorder 1, %s22
      %p208 = scmp.lt.s32.totalorder %s22, 3
      %p209 = pnand %p207, %p208
      %p210 = pneg %p209
      // Predicated region
      $region9: #{tpu_custom_call.1} parent=5 // pred_check
        _
      $region10: #{tpu_custom_call.1} parent=5 // pred_check_branch
        %212 = sbr.rel (%p209) target = $region12
      $region11: #{tpu_custom_call.1} parent=5 // pred_region
        %s213 = ssub.s32 %s22, 1
        // Predicated region
        $region13: #{tpu_custom_call.1} parent=11 // pred_check
          %p214 = pneg %p43
        $region14: #{tpu_custom_call.1} parent=11 // pred_check_branch
          %216 = sbr.rel (%p214) target = $region16
        $region15: #{tpu_custom_call.1} parent=11 // pred_region
          %s218 = ssub.s32 256, 256
          %219 = vsyncadd [#allocation3], %s218
          %s220 = sshll.u32 [#allocation2], 4
          %s221 = int_to_ptr.vmem [resolvable:$true] %s220
          %226 = dma.hbm_to_vmem [thread:$0]  %s0, 256, %s221, [#allocation3], 128, 128, 8
        $region16: #{tpu_custom_call.1} parent=11 // pred_fallthru
          _
      $region12: #{tpu_custom_call.1} parent=5 // pred_fallthru
        _
      %p227 = scmp.lt.s32.totalorder %s22, 2
      // Predicated region
      $region17: #{tpu_custom_call.1} parent=5 // pred_check
        %p228 = pneg %p227
      $region18: #{tpu_custom_call.1} parent=5 // pred_check_branch
        %230 = sbr.rel (%p228) target = $region20
      $region19: #{tpu_custom_call.1} parent=5 // pred_region
        // Predicated region
        $region21: #{tpu_custom_call.1} parent=19 // pred_check
          %p231 = pneg %p63
        $region22: #{tpu_custom_call.1} parent=19 // pred_check_branch
          %233 = sbr.rel (%p231) target = $region24
        $region23: #{tpu_custom_call.1} parent=19 // pred_region
          %p234 = scmp.lt.s32.totalorder %s22, 1
          %s235 = scalar_select %p234, %s22, 1
          %s236 = smul.addr %s235, 3
          %s237 = smul.addr %s236, 8
          %s238 = scalar_lea.vmem %s1, %s237
        $region24: #{tpu_custom_call.1} parent=19 // pred_fallthru
          _
        // Predicated region
        $region25: #{tpu_custom_call.1} parent=19 // pred_check
          %p239 = pneg %p89
        $region26: #{tpu_custom_call.1} parent=19 // pred_check_branch
          %241 = sbr.rel (%p239) target = $region28
        $region27: #{tpu_custom_call.1} parent=19 // pred_region
          %p242 = scmp.lt.s32.totalorder %s22, 1
          %s243 = scalar_select %p242, %s22, 1
          %s244 = smul.addr %s243, 2
          %s245 = smul.addr %s244, 8
          %s246 = scalar_lea.vmem %s2, %s245
        $region28: #{tpu_custom_call.1} parent=19 // pred_fallthru
          _
        // Predicated region
        $region29: #{tpu_custom_call.1} parent=19 // pred_check
          %p247 = pneg %p115
        $region30: #{tpu_custom_call.1} parent=19 // pred_check_branch
          %249 = sbr.rel (%p247) target = $region32
        $region31: #{tpu_custom_call.1} parent=19 // pred_region
          %s250 = sand.u32 %s22, 1
          %s251 = scalar_lea.sflag [#allocation6], %s250
          %s252 = sand.u32 %s105, 1
          %s253 = smul.addr %s252, 32
          %s254 = scalar_lea.vmem [#allocation5], %s253
          %s256 = ssub.s32 512, 512
          %257 = vsyncadd %s251, %s256
          %s258 = smul.addr %s22, 4
          %s259 = smul.addr %s258, 128
          %s260 = scalar_lea.hbm %s3, %s259
          %s261 = sshll.u32 %s254, 4
          %s262 = int_to_ptr.vmem [resolvable:$true] %s261
          %267 = dma.hbm_to_vmem [thread:$0]  %s260, 512, %s262, %s251, 128, 128, 8
        $region32: #{tpu_custom_call.1} parent=19 // pred_fallthru
          _
        // Predicated region
        $region33: #{tpu_custom_call.1} parent=19 // pred_check
          %p268 = pneg %p141
        $region34: #{tpu_custom_call.1} parent=19 // pred_check_branch
          %270 = sbr.rel (%p268) target = $region36
        $region35: #{tpu_custom_call.1} parent=19 // pred_region
          %s271 = sand.u32 %s22, 1
          %s272 = scalar_lea.sflag [#allocation6], %s271
          %s273 = sand.u32 %s131, 1
          %s274 = smul.addr %s273, 32
          %s275 = scalar_lea.vmem [#allocation7], %s274
          %s277 = ssub.s32 512, 512
          %278 = vsyncadd %s272, %s277
          %s279 = smul.addr %s22, 4
          %s280 = smul.addr %s279, 128
          %s281 = scalar_lea.hbm %s4, %s280
          %s282 = sshll.u32 %s275, 4
          %s283 = int_to_ptr.vmem [resolvable:$true] %s282
          %288 = dma.hbm_to_vmem [thread:$0]  %s281, 512, %s283, %s272, 128, 128, 8
        $region36: #{tpu_custom_call.1} parent=19 // pred_fallthru
          _
        // Predicated region
        $region37: #{tpu_custom_call.1} parent=19 // pred_check
          %p289 = pneg %p167
        $region38: #{tpu_custom_call.1} parent=19 // pred_check_branch
          %291 = sbr.rel (%p289) target = $region40
        $region39: #{tpu_custom_call.1} parent=19 // pred_region
          %s292 = sand.u32 %s157, 1
          %s293 = scalar_lea.sflag [#allocation9], %s292
          %s294 = sand.u32 %s157, 1
          %s295 = smul.addr %s294, 32
          %s296 = scalar_lea.vmem [#allocation8], %s295
          %s298 = ssub.s32 512, 512
          %299 = vsyncadd %s293, %s298
          %s300 = smul.addr %s22, 4
          %s301 = smul.addr %s300, 128
          %s302 = scalar_lea.hbm %s5, %s301
          %s303 = sshll.u32 %s296, 4
          %s304 = int_to_ptr.vmem [resolvable:$true] %s303
          %309 = dma.hbm_to_vmem [thread:$0]  %s302, 512, %s304, %s293, 128, 128, 8
        $region40: #{tpu_custom_call.1} parent=19 // pred_fallthru
          _
      $region20: #{tpu_custom_call.1} parent=5 // pred_fallthru
        _
      %p310 = scmp.le.s32.totalorder 1, %s22
      %p311 = scmp.lt.s32.totalorder %s22, 3
      %p312 = pnand %p310, %p311
      %p313 = pneg %p312
      // Predicated region
      $region41: #{tpu_custom_call.1} parent=5 // pred_check
        _
      $region42: #{tpu_custom_call.1} parent=5 // pred_check_branch
        %315 = sbr.rel (%p312) target = $region44
      $region43: #{tpu_custom_call.1} parent=5 // pred_region
        %s316 = ssub.s32 %s22, 1
        // Predicated region
        $region45: #{tpu_custom_call.1} parent=43 // pred_check
          %p317 = pneg %p43
        $region46: #{tpu_custom_call.1} parent=43 // pred_check_branch
          %319 = sbr.rel (%p317) target = $region48
        $region47: #{tpu_custom_call.1} parent=43 // pred_region
          %320 = dma.done [#allocation3], 256
        $region48: #{tpu_custom_call.1} parent=43 // pred_fallthru
          _
        %s321 = sand.u32 %s27, 1
        %s322 = scalar_lea.sflag [#allocation6], %s321
        %s323 = sand.u32 %s108, 1
        %s324 = smul.addr %s323, 32
        %s325 = scalar_lea.vmem [#allocation5], %s324
        // Predicated region
        $region49: #{tpu_custom_call.1} parent=43 // pred_check
          %p326 = pneg %p121
        $region50: #{tpu_custom_call.1} parent=43 // pred_check_branch
          %328 = sbr.rel (%p326) target = $region52
        $region51: #{tpu_custom_call.1} parent=43 // pred_region
          %329 = dma.done %s322, 512
        $region52: #{tpu_custom_call.1} parent=43 // pred_fallthru
          _
        %s330 = sand.u32 %s27, 1
        %s331 = scalar_lea.sflag [#allocation6], %s330
        %s332 = sand.u32 %s134, 1
        %s333 = smul.addr %s332, 32
        %s334 = scalar_lea.vmem [#allocation7], %s333
        // Predicated region
        $region53: #{tpu_custom_call.1} parent=43 // pred_check
          %p335 = pneg %p147
        $region54: #{tpu_custom_call.1} parent=43 // pred_check_branch
          %337 = sbr.rel (%p335) target = $region56
        $region55: #{tpu_custom_call.1} parent=43 // pred_region
          %338 = dma.done %s331, 512
        $region56: #{tpu_custom_call.1} parent=43 // pred_fallthru
          _
        %s339 = sand.u32 %s160, 1
        %s340 = scalar_lea.sflag [#allocation9], %s339
        %s341 = sand.u32 %s160, 1
        %s342 = smul.addr %s341, 32
        %s343 = scalar_lea.vmem [#allocation8], %s342
        // Predicated region
        $region57: #{tpu_custom_call.1} parent=43 // pred_check
          %p344 = pneg %p173
        $region58: #{tpu_custom_call.1} parent=43 // pred_check_branch
          %346 = sbr.rel (%p344) target = $region60
        $region59: #{tpu_custom_call.1} parent=43 // pred_region
          %347 = dma.done %s340, 512
        $region60: #{tpu_custom_call.1} parent=43 // pred_fallthru
          _
        %p348 = pneg %p43
        %p349 = pneg %p40
        %p350 = scmp.lt.s32.totalorder %s27, 1
        %s351 = scalar_select %p350, %s27, 1
        %s352 = smul.addr %s351, 3
        %s353 = smul.addr %s352, 8
        %s354 = scalar_lea.vmem %s1, %s353
        %p355 = pneg %p69
        %p356 = pneg %p66
        %p357 = scmp.lt.s32.totalorder %s27, 1
        %s358 = scalar_select %p357, %s27, 1
        %s359 = smul.addr %s358, 2
        %s360 = smul.addr %s359, 8
        %s361 = scalar_lea.vmem %s2, %s360
        %p362 = pneg %p95
        %p363 = pneg %p92
        %s364 = sand.u32 %s27, 1
        %s365 = scalar_lea.sflag [#allocation6], %s364
        %s366 = sand.u32 %s108, 1
        %s367 = smul.addr %s366, 32
        %s368 = scalar_lea.vmem [#allocation5], %s367
        %p369 = pneg %p121
        %p370 = pneg %p118
        %s371 = sand.u32 %s27, 1
        %s372 = scalar_lea.sflag [#allocation6], %s371
        %s373 = sand.u32 %s134, 1
        %s374 = smul.addr %s373, 32
        %s375 = scalar_lea.vmem [#allocation7], %s374
        %p376 = pneg %p147
        %p377 = pneg %p144
        %s378 = sand.u32 %s160, 1
        %s379 = scalar_lea.sflag [#allocation9], %s378
        %s380 = sand.u32 %s160, 1
        %s381 = smul.addr %s380, 32
        %s382 = scalar_lea.vmem [#allocation8], %s381
        %p383 = pneg %p173
        %p384 = pneg %p170
        %p385 = pneg %p199
        %p386 = pneg %p196
        %s387 = sand.u32 %s186, 1
        %s388 = scalar_lea.sflag [#allocation4], %s387
        %s389 = sand.u32 %s186, 1
        %s390 = smul.addr %s389, 16
        %s391 = scalar_lea.vmem [#allocation10], %s390
        %p392 = scmp.lt.s32.totalorder %s27, 1
        %s393 = scalar_select %p392, %s27, 1
        %s394 = smul.addr %s393, 3
        %s395 = smul.addr %s394, 8
        %s396 = scalar_lea.vmem %s1, %s395
        %p397 = scmp.lt.s32.totalorder %s27, 1
        %s398 = scalar_select %p397, %s27, 1
        %s399 = smul.addr %s398, 2
        %s400 = smul.addr %s399, 8
        %s401 = scalar_lea.vmem %s2, %s400
        %v402 = vld [vmem:[%s396] sm:$0xff]
        %v403 = vld [vmem:[%s396 + $0x8] sm:$0xff]
        %v404 = vld [vmem:[%s396 + $0x10] sm:$0xff]
        %v405 = vld [vmem:[%s325] sm:$0xff]
        %v406 = vld [vmem:[%s325 + $0x8] sm:$0xff]
        %v407 = vld [vmem:[%s325 + $0x10] sm:$0xff]
        %v408 = vld [vmem:[%s325 + $0x18] sm:$0xff]
        %v409 = vld [vmem:[%s334] sm:$0xff]
        %v410 = vld [vmem:[%s334 + $0x8] sm:$0xff]
        %v411 = vld [vmem:[%s334 + $0x10] sm:$0xff]
        %v412 = vld [vmem:[%s334 + $0x18] sm:$0xff]
        %v413 = vld [vmem:[%s343] sm:$0xff]
        %v414 = vld [vmem:[%s343 + $0x8] sm:$0xff]
        %v415 = vld [vmem:[%s343 + $0x10] sm:$0xff]
        %v416 = vld [vmem:[%s343 + $0x18] sm:$0xff]
        %v417 = vld [vmem:[%s401] sm:$0x1]
        %v418 = vld [vmem:[%s401 + $0x1] sm:$0x1]
        %v419 = vld [vmem:[%s401 + $0x2] sm:$0x1]
        %v420 = vld [vmem:[%s401 + $0x3] sm:$0x1]
        %v421 = vld [vmem:[%s401 + $0x4] sm:$0x1]
        %v422 = vld [vmem:[%s401 + $0x5] sm:$0x1]
        %v423 = vld [vmem:[%s401 + $0x6] sm:$0x1]
        %v424 = vld [vmem:[%s401 + $0x7] sm:$0x1]
        %v425 = vld [vmem:[%s401 + $0x8] sm:$0x1]
        %v426 = vlaneseq
        %v427 = vshrl.u32 %v426, 7
        %vm428 = vcmp.lt.s32.totalorder %v427, 8
        %v429 = vsel %vm428, 1, 0
        %v430 = vcvt.s32.f32 %v429
        %v431 = vld [vmem:[#allocation2] sm:$0xff]
        %vm432 = vcmask 195584
        %v434 = vsel %vm432, %v431, 0
        %436 = vmatprep.subr.mxu0 0.0
        %437 = vmatpush1.msra.mxu0 0.0
        %438 = vmatprep.subr.mxu0 0.0
        %439 = vmatpush1.msra.mxu0 0.0
        %440 = vmatprep.subr.mxu0 0.0
        %441 = vmatpush1.msra.mxu0 0.0
        %442 = vmatprep.subr.mxu0 0.0
        %443 = vmatpush1.msra.mxu0 0.0
        %444 = vmatprep.subr.mxu0 0.0
        %445 = vmatpush1.msra.mxu0 0.0
        %446 = vmatprep.subr.mxu0 0.0
        %447 = vmatpush1.msra.mxu0 0.0
        %448 = vmatprep.subr.mxu0 0.0
        %449 = vmatpush1.msra.mxu0 0.0
        %450 = vmatprep.subr.mxu0 0.0
        %451 = vmatpush1.msra.mxu0 0.0
        %452 = vmatprep.subr.mxu0 0.0
        %453 = vmatpush1.msra.mxu0 0.0
        %454 = vmatprep.subr.mxu0 0.0
        %455 = vmatpush1.msra.mxu0 0.0
        %456 = vmatprep.subr.mxu0 0.0
        %457 = vmatpush1.msra.mxu0 0.0
        %458 = vmatprep.subr.mxu0 0.0
        %459 = vmatpush1.msra.mxu0 0.0
        %460 = vmatprep.subr.mxu0 0.0
        %461 = vmatpush1.msra.mxu0 0.0
        %462 = vmatprep.subr.mxu0 0.0
        %463 = vmatpush1.msra.mxu0 %v404
        %464 = vmatprep.subr.mxu0 0.0
        %465 = vmatpush1.msra.mxu0 %v403
        %466 = vmatprep.subr.mxu0 0.0
        %467 = vmatpush1.msra.mxu0 %v402
        %468 = vmatprep.subr.mxu0 0.0
        %469 = vmatpush2.msra.mxu0 0.0
        %470 = vmatprep.subr.mxu0 0.0
        %471 = vmatpush2.msra.mxu0 0.0
        %472 = vmatprep.subr.mxu0 0.0
        %473 = vmatpush2.msra.mxu0 0.0
        %474 = vmatprep.subr.mxu0 0.0
        %475 = vmatpush2.msra.mxu0 0.0
        %476 = vmatprep.subr.mxu0 0.0
        %477 = vmatpush2.msra.mxu0 0.0
        %478 = vmatprep.subr.mxu0 0.0
        %479 = vmatpush2.msra.mxu0 0.0
        %480 = vmatprep.subr.mxu0 0.0
        %481 = vmatpush2.msra.mxu0 0.0
        %482 = vmatprep.subr.mxu0 0.0
        %483 = vmatpush2.msra.mxu0 0.0
        %484 = vmatprep.subr.mxu0 0.0
        %485 = vmatpush2.msra.mxu0 0.0
        %486 = vmatprep.subr.mxu0 0.0
        %487 = vmatpush2.msra.mxu0 0.0
        %488 = vmatprep.subr.mxu0 0.0
        %489 = vmatpush2.msra.mxu0 0.0
        %490 = vmatprep.subr.mxu0 0.0
        %491 = vmatpush2.msra.mxu0 0.0
        %492 = vmatprep.subr.mxu0 0.0
        %493 = vmatpush2.msra.mxu0 0.0
        %494 = vmatprep.subr.mxu0 0.0
        %495 = vmatpush2.msra.mxu0 0.0
        %496 = vmatprep.subr.mxu0 0.0
        %497 = vmatpush2.msra.mxu0 0.0
        %498 = vmatprep.subr.mxu0 0.0
        %499 = vmatpush2.msra.mxu0 0.0
        %500 = vmatprep.mubr.f32.mxu0 0.0
        %501 = vmatmul.mubr.f32.gmra.mxu0 %v434
        %v502 = vpop.f32.mrf.mxu0
        %v503 = vadd.f32 0.0, %v502
        %v504 = vpop.f32.mrf.mxu0
        %505 = vdwg.mxu0
        %v506 = vmul.f32 %v503, %v430
        %vm507 = vcmask 261120
        %v508 = vsel %vm507, %v506, 0.0
        %v509 = vrot.slane %v508, 4
        %v510 = vadd.f32 %v508, %v509
        %v511 = vrot.slane %v510, 2
        %v512 = vadd.f32 %v510, %v511
        %v513 = vrot.slane %v512, 1
        %v514 = vadd.f32 %v512, %v513
        %v515 = vmul.f32 %v514, 0.125
        %v516 = vsub.f32 %v503, %v515
        %v517 = vmul.f32 %v516, %v430
        %v518 = vmul.f32 %v517, %v517
        %v519 = vsel %vm507, %v518, 0.0
        %v520 = vrot.slane %v519, 4
        %v521 = vadd.f32 %v519, %v520
        %v522 = vrot.slane %v521, 2
        %v523 = vadd.f32 %v521, %v522
        %v524 = vrot.slane %v523, 1
        %v525 = vadd.f32 %v523, %v524
        %v526 = vmul.f32 %v525, 0.125
        %v527 = vadd.f32 %v526, 1e-05
        %v528 = vrsqrt.pop %v527
        %v529 = vmul.f32 %v516, %v528
        %v530 = vlaneseq
        %v531 = vshrl.u32 %v530, 7
        %v532 = vsub.s32 0, %v531
        %v533 = vrot.slane %v417, %v532
        %v534 = vmul.f32 %v529, %v533
        %v535 = vlaneseq
        %v536 = vshrl.u32 %v535, 7
        %v537 = vsub.s32 0, %v536
        %v538 = vrot.slane %v418, %v537
        %v539 = vadd.f32 %v534, %v538
        %vm540 = vcmp.ge.f32.partialorder %v539, 0.0
        %v541 = vmul.f32 %v539, 0.01
        %v542 = vsel %vm540, %v539, %v541
        %v543 = vlaneseq
        %v544 = vshrl.u32 %v543, 7
        %v545 = vsub.s32 0, %v544
        %v546 = vrot.slane %v423, %v545
        %v548 = vsel %vm507, %v542, 0
        %550 = vmatprep.subr.mxu0 0.0
        %551 = vmatpush1.msra.mxu0 0.0
        %552 = vmatprep.subr.mxu0 0.0
        %553 = vmatpush1.msra.mxu0 0.0
        %554 = vmatprep.subr.mxu0 0.0
        %555 = vmatpush1.msra.mxu0 0.0
        %556 = vmatprep.subr.mxu0 0.0
        %557 = vmatpush1.msra.mxu0 0.0
        %558 = vmatprep.subr.mxu0 0.0
        %559 = vmatpush1.msra.mxu0 0.0
        %560 = vmatprep.subr.mxu0 0.0
        %561 = vmatpush1.msra.mxu0 0.0
        %562 = vmatprep.subr.mxu0 0.0
        %563 = vmatpush1.msra.mxu0 0.0
        %564 = vmatprep.subr.mxu0 0.0
        %565 = vmatpush1.msra.mxu0 0.0
        %566 = vmatprep.subr.mxu0 0.0
        %567 = vmatpush1.msra.mxu0 0.0
        %568 = vmatprep.subr.mxu0 0.0
        %569 = vmatpush1.msra.mxu0 0.0
        %570 = vmatprep.subr.mxu0 0.0
        %571 = vmatpush1.msra.mxu0 0.0
        %572 = vmatprep.subr.mxu0 0.0
        %573 = vmatpush1.msra.mxu0 0.0
        %574 = vmatprep.subr.mxu0 0.0
        %575 = vmatpush1.msra.mxu0 %v408
        %576 = vmatprep.subr.mxu0 0.0
        %577 = vmatpush1.msra.mxu0 %v407
        %578 = vmatprep.subr.mxu0 0.0
        %579 = vmatpush1.msra.mxu0 %v406
        %580 = vmatprep.subr.mxu0 0.0
        %581 = vmatpush1.msra.mxu0 %v405
        %582 = vmatprep.subr.mxu0 0.0
        %583 = vmatpush2.msra.mxu0 0.0
        %584 = vmatprep.subr.mxu0 0.0
        %585 = vmatpush2.msra.mxu0 0.0
        %586 = vmatprep.subr.mxu0 0.0
        %587 = vmatpush2.msra.mxu0 0.0
        %588 = vmatprep.subr.mxu0 0.0
        %589 = vmatpush2.msra.mxu0 0.0
        %590 = vmatprep.subr.mxu0 0.0
        %591 = vmatpush2.msra.mxu0 0.0
        %592 = vmatprep.subr.mxu0 0.0
        %593 = vmatpush2.msra.mxu0 0.0
        %594 = vmatprep.subr.mxu0 0.0
        %595 = vmatpush2.msra.mxu0 0.0
        %596 = vmatprep.subr.mxu0 0.0
        %597 = vmatpush2.msra.mxu0 0.0
        %598 = vmatprep.subr.mxu0 0.0
        %599 = vmatpush2.msra.mxu0 0.0
        %600 = vmatprep.subr.mxu0 0.0
        %601 = vmatpush2.msra.mxu0 0.0
        %602 = vmatprep.subr.mxu0 0.0
        %603 = vmatpush2.msra.mxu0 0.0
        %604 = vmatprep.subr.mxu0 0.0
        %605 = vmatpush2.msra.mxu0 0.0
        %606 = vmatprep.subr.mxu0 0.0
        %607 = vmatpush2.msra.mxu0 0.0
        %608 = vmatprep.subr.mxu0 0.0
        %609 = vmatpush2.msra.mxu0 0.0
        %610 = vmatprep.subr.mxu0 0.0
        %611 = vmatpush2.msra.mxu0 0.0
        %612 = vmatprep.subr.mxu0 0.0
        %613 = vmatpush2.msra.mxu0 0.0
        %614 = vmatprep.mubr.f32.mxu0 0.0
        %615 = vmatmul.mubr.f32.gmra.mxu0 %v548
        %v616 = vpop.f32.mrf.mxu0
        %v617 = vadd.f32 %v546, %v616
        %v618 = vpop.f32.mrf.mxu0
        %619 = vdwg.mxu0
        %v620 = vmul.f32 %v617, %v430
        %v621 = vsel %vm507, %v620, 0.0
        %v622 = vrot.slane %v621, 4
        %v623 = vadd.f32 %v621, %v622
        %v624 = vrot.slane %v623, 2
        %v625 = vadd.f32 %v623, %v624
        %v626 = vrot.slane %v625, 1
        %v627 = vadd.f32 %v625, %v626
        %v628 = vmul.f32 %v627, 0.125
        %v629 = vsub.f32 %v617, %v628
        %v630 = vmul.f32 %v629, %v430
        %v631 = vmul.f32 %v630, %v630
        %v632 = vsel %vm507, %v631, 0.0
        %v633 = vrot.slane %v632, 4
        %v634 = vadd.f32 %v632, %v633
        %v635 = vrot.slane %v634, 2
        %v636 = vadd.f32 %v634, %v635
        %v637 = vrot.slane %v636, 1
        %v638 = vadd.f32 %v636, %v637
        %v639 = vmul.f32 %v638, 0.125
        %v640 = vadd.f32 %v639, 1e-05
        %v641 = vrsqrt.pop %v640
        %v642 = vmul.f32 %v629, %v641
        %v643 = vlaneseq
        %v644 = vshrl.u32 %v643, 7
        %v645 = vsub.s32 0, %v644
        %v646 = vrot.slane %v419, %v645
        %v647 = vmul.f32 %v642, %v646
        %v648 = vlaneseq
        %v649 = vshrl.u32 %v648, 7
        %v650 = vsub.s32 0, %v649
        %v651 = vrot.slane %v420, %v650
        %v652 = vadd.f32 %v647, %v651
        %vm653 = vcmp.ge.f32.partialorder %v652, 0.0
        %v654 = vmul.f32 %v652, 0.01
        %v655 = vsel %vm653, %v652, %v654
        %v656 = vlaneseq
        %v657 = vshrl.u32 %v656, 7
        %v658 = vsub.s32 0, %v657
        %v659 = vrot.slane %v424, %v658
        %v661 = vsel %vm507, %v655, 0
        %663 = vmatprep.subr.mxu0 0.0
        %664 = vmatpush1.msra.mxu0 0.0
        %665 = vmatprep.subr.mxu0 0.0
        %666 = vmatpush1.msra.mxu0 0.0
        %667 = vmatprep.subr.mxu0 0.0
        %668 = vmatpush1.msra.mxu0 0.0
        %669 = vmatprep.subr.mxu0 0.0
        %670 = vmatpush1.msra.mxu0 0.0
        %671 = vmatprep.subr.mxu0 0.0
        %672 = vmatpush1.msra.mxu0 0.0
        %673 = vmatprep.subr.mxu0 0.0
        %674 = vmatpush1.msra.mxu0 0.0
        %675 = vmatprep.subr.mxu0 0.0
        %676 = vmatpush1.msra.mxu0 0.0
        %677 = vmatprep.subr.mxu0 0.0
        %678 = vmatpush1.msra.mxu0 0.0
        %679 = vmatprep.subr.mxu0 0.0
        %680 = vmatpush1.msra.mxu0 0.0
        %681 = vmatprep.subr.mxu0 0.0
        %682 = vmatpush1.msra.mxu0 0.0
        %683 = vmatprep.subr.mxu0 0.0
        %684 = vmatpush1.msra.mxu0 0.0
        %685 = vmatprep.subr.mxu0 0.0
        %686 = vmatpush1.msra.mxu0 0.0
        %687 = vmatprep.subr.mxu0 0.0
        %688 = vmatpush1.msra.mxu0 %v412
        %689 = vmatprep.subr.mxu0 0.0
        %690 = vmatpush1.msra.mxu0 %v411
        %691 = vmatprep.subr.mxu0 0.0
        %692 = vmatpush1.msra.mxu0 %v410
        %693 = vmatprep.subr.mxu0 0.0
        %694 = vmatpush1.msra.mxu0 %v409
        %695 = vmatprep.subr.mxu0 0.0
        %696 = vmatpush2.msra.mxu0 0.0
        %697 = vmatprep.subr.mxu0 0.0
        %698 = vmatpush2.msra.mxu0 0.0
        %699 = vmatprep.subr.mxu0 0.0
        %700 = vmatpush2.msra.mxu0 0.0
        %701 = vmatprep.subr.mxu0 0.0
        %702 = vmatpush2.msra.mxu0 0.0
        %703 = vmatprep.subr.mxu0 0.0
        %704 = vmatpush2.msra.mxu0 0.0
        %705 = vmatprep.subr.mxu0 0.0
        %706 = vmatpush2.msra.mxu0 0.0
        %707 = vmatprep.subr.mxu0 0.0
        %708 = vmatpush2.msra.mxu0 0.0
        %709 = vmatprep.subr.mxu0 0.0
        %710 = vmatpush2.msra.mxu0 0.0
        %711 = vmatprep.subr.mxu0 0.0
        %712 = vmatpush2.msra.mxu0 0.0
        %713 = vmatprep.subr.mxu0 0.0
        %714 = vmatpush2.msra.mxu0 0.0
        %715 = vmatprep.subr.mxu0 0.0
        %716 = vmatpush2.msra.mxu0 0.0
        %717 = vmatprep.subr.mxu0 0.0
        %718 = vmatpush2.msra.mxu0 0.0
        %719 = vmatprep.subr.mxu0 0.0
        %720 = vmatpush2.msra.mxu0 0.0
        %721 = vmatprep.subr.mxu0 0.0
        %722 = vmatpush2.msra.mxu0 0.0
        %723 = vmatprep.subr.mxu0 0.0
        %724 = vmatpush2.msra.mxu0 0.0
        %725 = vmatprep.subr.mxu0 0.0
        %726 = vmatpush2.msra.mxu0 0.0
        %727 = vmatprep.mubr.f32.mxu0 0.0
        %728 = vmatmul.mubr.f32.gmra.mxu0 %v661
        %v729 = vpop.f32.mrf.mxu0
        %v730 = vadd.f32 %v659, %v729
        %v731 = vpop.f32.mrf.mxu0
        %732 = vdwg.mxu0
        %v733 = vmul.f32 %v730, %v430
        %v734 = vsel %vm507, %v733, 0.0
        %v735 = vrot.slane %v734, 4
        %v736 = vadd.f32 %v734, %v735
        %v737 = vrot.slane %v736, 2
        %v738 = vadd.f32 %v736, %v737
        %v739 = vrot.slane %v738, 1
        %v740 = vadd.f32 %v738, %v739
        %v741 = vmul.f32 %v740, 0.125
        %v742 = vsub.f32 %v730, %v741
        %v743 = vmul.f32 %v742, %v430
        %v744 = vmul.f32 %v743, %v743
        %v745 = vsel %vm507, %v744, 0.0
        %v746 = vrot.slane %v745, 4
        %v747 = vadd.f32 %v745, %v746
        %v748 = vrot.slane %v747, 2
        %v749 = vadd.f32 %v747, %v748
        %v750 = vrot.slane %v749, 1
        %v751 = vadd.f32 %v749, %v750
        %v752 = vmul.f32 %v751, 0.125
        %v753 = vadd.f32 %v752, 1e-05
        %v754 = vrsqrt.pop %v753
        %v755 = vmul.f32 %v742, %v754
        %v756 = vlaneseq
        %v757 = vshrl.u32 %v756, 7
        %v758 = vsub.s32 0, %v757
        %v759 = vrot.slane %v421, %v758
        %v760 = vmul.f32 %v755, %v759
        %v761 = vlaneseq
        %v762 = vshrl.u32 %v761, 7
        %v763 = vsub.s32 0, %v762
        %v764 = vrot.slane %v422, %v763
        %v765 = vadd.f32 %v760, %v764
        %vm766 = vcmp.ge.f32.partialorder %v765, 0.0
        %v767 = vmul.f32 %v765, 0.01
        %v768 = vsel %vm766, %v765, %v767
        %v769 = vlaneseq
        %v770 = vshrl.u32 %v769, 7
        %v771 = vsub.s32 0, %v770
        %v772 = vrot.slane %v425, %v771
        %v774 = vsel %vm507, %v768, 0
        %776 = vmatprep.subr.mxu0 0.0
        %777 = vmatpush1.msra.mxu0 0.0
        %778 = vmatprep.subr.mxu0 0.0
        %779 = vmatpush1.msra.mxu0 0.0
        %780 = vmatprep.subr.mxu0 0.0
        %781 = vmatpush1.msra.mxu0 0.0
        %782 = vmatprep.subr.mxu0 0.0
        %783 = vmatpush1.msra.mxu0 0.0
        %784 = vmatprep.subr.mxu0 0.0
        %785 = vmatpush1.msra.mxu0 0.0
        %786 = vmatprep.subr.mxu0 0.0
        %787 = vmatpush1.msra.mxu0 0.0
        %788 = vmatprep.subr.mxu0 0.0
        %789 = vmatpush1.msra.mxu0 0.0
        %790 = vmatprep.subr.mxu0 0.0
        %791 = vmatpush1.msra.mxu0 0.0
        %792 = vmatprep.subr.mxu0 0.0
        %793 = vmatpush1.msra.mxu0 0.0
        %794 = vmatprep.subr.mxu0 0.0
        %795 = vmatpush1.msra.mxu0 0.0
        %796 = vmatprep.subr.mxu0 0.0
        %797 = vmatpush1.msra.mxu0 0.0
        %798 = vmatprep.subr.mxu0 0.0
        %799 = vmatpush1.msra.mxu0 0.0
        %800 = vmatprep.subr.mxu0 0.0
        %801 = vmatpush1.msra.mxu0 %v416
        %802 = vmatprep.subr.mxu0 0.0
        %803 = vmatpush1.msra.mxu0 %v415
        %804 = vmatprep.subr.mxu0 0.0
        %805 = vmatpush1.msra.mxu0 %v414
        %806 = vmatprep.subr.mxu0 0.0
        %807 = vmatpush1.msra.mxu0 %v413
        %808 = vmatprep.subr.mxu0 0.0
        %809 = vmatpush2.msra.mxu0 0.0
        %810 = vmatprep.subr.mxu0 0.0
        %811 = vmatpush2.msra.mxu0 0.0
        %812 = vmatprep.subr.mxu0 0.0
        %813 = vmatpush2.msra.mxu0 0.0
        %814 = vmatprep.subr.mxu0 0.0
        %815 = vmatpush2.msra.mxu0 0.0
        %816 = vmatprep.subr.mxu0 0.0
        %817 = vmatpush2.msra.mxu0 0.0
        %818 = vmatprep.subr.mxu0 0.0
        %819 = vmatpush2.msra.mxu0 0.0
        %820 = vmatprep.subr.mxu0 0.0
        %821 = vmatpush2.msra.mxu0 0.0
        %822 = vmatprep.subr.mxu0 0.0
        %823 = vmatpush2.msra.mxu0 0.0
        %824 = vmatprep.subr.mxu0 0.0
        %825 = vmatpush2.msra.mxu0 0.0
        %826 = vmatprep.subr.mxu0 0.0
        %827 = vmatpush2.msra.mxu0 0.0
        %828 = vmatprep.subr.mxu0 0.0
        %829 = vmatpush2.msra.mxu0 0.0
        %830 = vmatprep.subr.mxu0 0.0
        %831 = vmatpush2.msra.mxu0 0.0
        %832 = vmatprep.subr.mxu0 0.0
        %833 = vmatpush2.msra.mxu0 0.0
        %834 = vmatprep.subr.mxu0 0.0
        %835 = vmatpush2.msra.mxu0 0.0
        %836 = vmatprep.subr.mxu0 0.0
        %837 = vmatpush2.msra.mxu0 0.0
        %838 = vmatprep.subr.mxu0 0.0
        %839 = vmatpush2.msra.mxu0 0.0
        %840 = vmatprep.mubr.f32.mxu0 0.0
        %841 = vmatmul.mubr.f32.gmra.mxu0 %v774
        %v842 = vpop.f32.mrf.mxu0
        %v843 = vadd.f32 %v772, %v842
        %v844 = vpop.f32.mrf.mxu0
        %845 = vdwg.mxu0
        %846 = vst [vmem:[%s391] sm:$0xff] %v843
        %s847 = scalar_lea.vmem [#allocation2], 8
        %v848 = vld [vmem:[%s847] sm:$0xff]
        %v850 = vsel %vm432, %v848, 0
        %852 = vmatprep.subr.mxu0 0.0
        %853 = vmatpush1.msra.mxu0 0.0
        %854 = vmatprep.subr.mxu0 0.0
        %855 = vmatpush1.msra.mxu0 0.0
        %856 = vmatprep.subr.mxu0 0.0
        %857 = vmatpush1.msra.mxu0 0.0
        %858 = vmatprep.subr.mxu0 0.0
        %859 = vmatpush1.msra.mxu0 0.0
        %860 = vmatprep.subr.mxu0 0.0
        %861 = vmatpush1.msra.mxu0 0.0
        %862 = vmatprep.subr.mxu0 0.0
        %863 = vmatpush1.msra.mxu0 0.0
        %864 = vmatprep.subr.mxu0 0.0
        %865 = vmatpush1.msra.mxu0 0.0
        %866 = vmatprep.subr.mxu0 0.0
        %867 = vmatpush1.msra.mxu0 0.0
        %868 = vmatprep.subr.mxu0 0.0
        %869 = vmatpush1.msra.mxu0 0.0
        %870 = vmatprep.subr.mxu0 0.0
        %871 = vmatpush1.msra.mxu0 0.0
        %872 = vmatprep.subr.mxu0 0.0
        %873 = vmatpush1.msra.mxu0 0.0
        %874 = vmatprep.subr.mxu0 0.0
        %875 = vmatpush1.msra.mxu0 0.0
        %876 = vmatprep.subr.mxu0 0.0
        %877 = vmatpush1.msra.mxu0 0.0
        %878 = vmatprep.subr.mxu0 0.0
        %879 = vmatpush1.msra.mxu0 %v404
        %880 = vmatprep.subr.mxu0 0.0
        %881 = vmatpush1.msra.mxu0 %v403
        %882 = vmatprep.subr.mxu0 0.0
        %883 = vmatpush1.msra.mxu0 %v402
        %884 = vmatprep.subr.mxu0 0.0
        %885 = vmatpush2.msra.mxu0 0.0
        %886 = vmatprep.subr.mxu0 0.0
        %887 = vmatpush2.msra.mxu0 0.0
        %888 = vmatprep.subr.mxu0 0.0
        %889 = vmatpush2.msra.mxu0 0.0
        %890 = vmatprep.subr.mxu0 0.0
        %891 = vmatpush2.msra.mxu0 0.0
        %892 = vmatprep.subr.mxu0 0.0
        %893 = vmatpush2.msra.mxu0 0.0
        %894 = vmatprep.subr.mxu0 0.0
        %895 = vmatpush2.msra.mxu0 0.0
        %896 = vmatprep.subr.mxu0 0.0
        %897 = vmatpush2.msra.mxu0 0.0
        %898 = vmatprep.subr.mxu0 0.0
        %899 = vmatpush2.msra.mxu0 0.0
        %900 = vmatprep.subr.mxu0 0.0
        %901 = vmatpush2.msra.mxu0 0.0
        %902 = vmatprep.subr.mxu0 0.0
        %903 = vmatpush2.msra.mxu0 0.0
        %904 = vmatprep.subr.mxu0 0.0
        %905 = vmatpush2.msra.mxu0 0.0
        %906 = vmatprep.subr.mxu0 0.0
        %907 = vmatpush2.msra.mxu0 0.0
        %908 = vmatprep.subr.mxu0 0.0
        %909 = vmatpush2.msra.mxu0 0.0
        %910 = vmatprep.subr.mxu0 0.0
        %911 = vmatpush2.msra.mxu0 0.0
        %912 = vmatprep.subr.mxu0 0.0
        %913 = vmatpush2.msra.mxu0 0.0
        %914 = vmatprep.subr.mxu0 0.0
        %915 = vmatpush2.msra.mxu0 0.0
        %916 = vmatprep.mubr.f32.mxu0 0.0
        %917 = vmatmul.mubr.f32.gmra.mxu0 %v850
        %v918 = vpop.f32.mrf.mxu0
        %v919 = vadd.f32 0.0, %v918
        %v920 = vpop.f32.mrf.mxu0
        %921 = vdwg.mxu0
        %v922 = vmul.f32 %v919, %v430
        %v923 = vsel %vm507, %v922, 0.0
        %v924 = vrot.slane %v923, 4
        %v925 = vadd.f32 %v923, %v924
        %v926 = vrot.slane %v925, 2
        %v927 = vadd.f32 %v925, %v926
        %v928 = vrot.slane %v927, 1
        %v929 = vadd.f32 %v927, %v928
        %v930 = vmul.f32 %v929, 0.125
        %v931 = vsub.f32 %v919, %v930
        %v932 = vmul.f32 %v931, %v430
        %v933 = vmul.f32 %v932, %v932
        %v934 = vsel %vm507, %v933, 0.0
        %v935 = vrot.slane %v934, 4
        %v936 = vadd.f32 %v934, %v935
        %v937 = vrot.slane %v936, 2
        %v938 = vadd.f32 %v936, %v937
        %v939 = vrot.slane %v938, 1
        %v940 = vadd.f32 %v938, %v939
        %v941 = vmul.f32 %v940, 0.125
        %v942 = vadd.f32 %v941, 1e-05
        %v943 = vrsqrt.pop %v942
        %v944 = vmul.f32 %v931, %v943
        %v945 = vmul.f32 %v944, %v533
        %v946 = vadd.f32 %v945, %v538
        %vm947 = vcmp.ge.f32.partialorder %v946, 0.0
        %v948 = vmul.f32 %v946, 0.01
        %v949 = vsel %vm947, %v946, %v948
        %v951 = vsel %vm507, %v949, 0
        %953 = vmatprep.subr.mxu0 0.0
        %954 = vmatpush1.msra.mxu0 0.0
        %955 = vmatprep.subr.mxu0 0.0
        %956 = vmatpush1.msra.mxu0 0.0
        %957 = vmatprep.subr.mxu0 0.0
        %958 = vmatpush1.msra.mxu0 0.0
        %959 = vmatprep.subr.mxu0 0.0
        %960 = vmatpush1.msra.mxu0 0.0
        %961 = vmatprep.subr.mxu0 0.0
        %962 = vmatpush1.msra.mxu0 0.0
        %963 = vmatprep.subr.mxu0 0.0
        %964 = vmatpush1.msra.mxu0 0.0
        %965 = vmatprep.subr.mxu0 0.0
        %966 = vmatpush1.msra.mxu0 0.0
        %967 = vmatprep.subr.mxu0 0.0
        %968 = vmatpush1.msra.mxu0 0.0
        %969 = vmatprep.subr.mxu0 0.0
        %970 = vmatpush1.msra.mxu0 0.0
        %971 = vmatprep.subr.mxu0 0.0
        %972 = vmatpush1.msra.mxu0 0.0
        %973 = vmatprep.subr.mxu0 0.0
        %974 = vmatpush1.msra.mxu0 0.0
        %975 = vmatprep.subr.mxu0 0.0
        %976 = vmatpush1.msra.mxu0 0.0
        %977 = vmatprep.subr.mxu0 0.0
        %978 = vmatpush1.msra.mxu0 %v408
        %979 = vmatprep.subr.mxu0 0.0
        %980 = vmatpush1.msra.mxu0 %v407
        %981 = vmatprep.subr.mxu0 0.0
        %982 = vmatpush1.msra.mxu0 %v406
        %983 = vmatprep.subr.mxu0 0.0
        %984 = vmatpush1.msra.mxu0 %v405
        %985 = vmatprep.subr.mxu0 0.0
        %986 = vmatpush2.msra.mxu0 0.0
        %987 = vmatprep.subr.mxu0 0.0
        %988 = vmatpush2.msra.mxu0 0.0
        %989 = vmatprep.subr.mxu0 0.0
        %990 = vmatpush2.msra.mxu0 0.0
        %991 = vmatprep.subr.mxu0 0.0
        %992 = vmatpush2.msra.mxu0 0.0
        %993 = vmatprep.subr.mxu0 0.0
        %994 = vmatpush2.msra.mxu0 0.0
        %995 = vmatprep.subr.mxu0 0.0
        %996 = vmatpush2.msra.mxu0 0.0
        %997 = vmatprep.subr.mxu0 0.0
        %998 = vmatpush2.msra.mxu0 0.0
        %999 = vmatprep.subr.mxu0 0.0
        %1000 = vmatpush2.msra.mxu0 0.0
        %1001 = vmatprep.subr.mxu0 0.0
        %1002 = vmatpush2.msra.mxu0 0.0
        %1003 = vmatprep.subr.mxu0 0.0
        %1004 = vmatpush2.msra.mxu0 0.0
        %1005 = vmatprep.subr.mxu0 0.0
        %1006 = vmatpush2.msra.mxu0 0.0
        %1007 = vmatprep.subr.mxu0 0.0
        %1008 = vmatpush2.msra.mxu0 0.0
        %1009 = vmatprep.subr.mxu0 0.0
        %1010 = vmatpush2.msra.mxu0 0.0
        %1011 = vmatprep.subr.mxu0 0.0
        %1012 = vmatpush2.msra.mxu0 0.0
        %1013 = vmatprep.subr.mxu0 0.0
        %1014 = vmatpush2.msra.mxu0 0.0
        %1015 = vmatprep.subr.mxu0 0.0
        %1016 = vmatpush2.msra.mxu0 0.0
        %1017 = vmatprep.mubr.f32.mxu0 0.0
        %1018 = vmatmul.mubr.f32.gmra.mxu0 %v951
        %v1019 = vpop.f32.mrf.mxu0
        %v1020 = vadd.f32 %v546, %v1019
        %v1021 = vpop.f32.mrf.mxu0
        %1022 = vdwg.mxu0
        %v1023 = vmul.f32 %v1020, %v430
        %v1024 = vsel %vm507, %v1023, 0.0
        %v1025 = vrot.slane %v1024, 4
        %v1026 = vadd.f32 %v1024, %v1025
        %v1027 = vrot.slane %v1026, 2
        %v1028 = vadd.f32 %v1026, %v1027
        %v1029 = vrot.slane %v1028, 1
        %v1030 = vadd.f32 %v1028, %v1029
        %v1031 = vmul.f32 %v1030, 0.125
        %v1032 = vsub.f32 %v1020, %v1031
        %v1033 = vmul.f32 %v1032, %v430
        %v1034 = vmul.f32 %v1033, %v1033
        %v1035 = vsel %vm507, %v1034, 0.0
        %v1036 = vrot.slane %v1035, 4
        %v1037 = vadd.f32 %v1035, %v1036
        %v1038 = vrot.slane %v1037, 2
        %v1039 = vadd.f32 %v1037, %v1038
        %v1040 = vrot.slane %v1039, 1
        %v1041 = vadd.f32 %v1039, %v1040
        %v1042 = vmul.f32 %v1041, 0.125
        %v1043 = vadd.f32 %v1042, 1e-05
        %v1044 = vrsqrt.pop %v1043
        %v1045 = vmul.f32 %v1032, %v1044
        %v1046 = vmul.f32 %v1045, %v646
        %v1047 = vadd.f32 %v1046, %v651
        %vm1048 = vcmp.ge.f32.partialorder %v1047, 0.0
        %v1049 = vmul.f32 %v1047, 0.01
        %v1050 = vsel %vm1048, %v1047, %v1049
        %v1052 = vsel %vm507, %v1050, 0
        %1054 = vmatprep.subr.mxu0 0.0
        %1055 = vmatpush1.msra.mxu0 0.0
        %1056 = vmatprep.subr.mxu0 0.0
        %1057 = vmatpush1.msra.mxu0 0.0
        %1058 = vmatprep.subr.mxu0 0.0
        %1059 = vmatpush1.msra.mxu0 0.0
        %1060 = vmatprep.subr.mxu0 0.0
        %1061 = vmatpush1.msra.mxu0 0.0
        %1062 = vmatprep.subr.mxu0 0.0
        %1063 = vmatpush1.msra.mxu0 0.0
        %1064 = vmatprep.subr.mxu0 0.0
        %1065 = vmatpush1.msra.mxu0 0.0
        %1066 = vmatprep.subr.mxu0 0.0
        %1067 = vmatpush1.msra.mxu0 0.0
        %1068 = vmatprep.subr.mxu0 0.0
        %1069 = vmatpush1.msra.mxu0 0.0
        %1070 = vmatprep.subr.mxu0 0.0
        %1071 = vmatpush1.msra.mxu0 0.0
        %1072 = vmatprep.subr.mxu0 0.0
        %1073 = vmatpush1.msra.mxu0 0.0
        %1074 = vmatprep.subr.mxu0 0.0
        %1075 = vmatpush1.msra.mxu0 0.0
        %1076 = vmatprep.subr.mxu0 0.0
        %1077 = vmatpush1.msra.mxu0 0.0
        %1078 = vmatprep.subr.mxu0 0.0
        %1079 = vmatpush1.msra.mxu0 %v412
        %1080 = vmatprep.subr.mxu0 0.0
        %1081 = vmatpush1.msra.mxu0 %v411
        %1082 = vmatprep.subr.mxu0 0.0
        %1083 = vmatpush1.msra.mxu0 %v410
        %1084 = vmatprep.subr.mxu0 0.0
        %1085 = vmatpush1.msra.mxu0 %v409
        %1086 = vmatprep.subr.mxu0 0.0
        %1087 = vmatpush2.msra.mxu0 0.0
        %1088 = vmatprep.subr.mxu0 0.0
        %1089 = vmatpush2.msra.mxu0 0.0
        %1090 = vmatprep.subr.mxu0 0.0
        %1091 = vmatpush2.msra.mxu0 0.0
        %1092 = vmatprep.subr.mxu0 0.0
        %1093 = vmatpush2.msra.mxu0 0.0
        %1094 = vmatprep.subr.mxu0 0.0
        %1095 = vmatpush2.msra.mxu0 0.0
        %1096 = vmatprep.subr.mxu0 0.0
        %1097 = vmatpush2.msra.mxu0 0.0
        %1098 = vmatprep.subr.mxu0 0.0
        %1099 = vmatpush2.msra.mxu0 0.0
        %1100 = vmatprep.subr.mxu0 0.0
        %1101 = vmatpush2.msra.mxu0 0.0
        %1102 = vmatprep.subr.mxu0 0.0
        %1103 = vmatpush2.msra.mxu0 0.0
        %1104 = vmatprep.subr.mxu0 0.0
        %1105 = vmatpush2.msra.mxu0 0.0
        %1106 = vmatprep.subr.mxu0 0.0
        %1107 = vmatpush2.msra.mxu0 0.0
        %1108 = vmatprep.subr.mxu0 0.0
        %1109 = vmatpush2.msra.mxu0 0.0
        %1110 = vmatprep.subr.mxu0 0.0
        %1111 = vmatpush2.msra.mxu0 0.0
        %1112 = vmatprep.subr.mxu0 0.0
        %1113 = vmatpush2.msra.mxu0 0.0
        %1114 = vmatprep.subr.mxu0 0.0
        %1115 = vmatpush2.msra.mxu0 0.0
        %1116 = vmatprep.subr.mxu0 0.0
        %1117 = vmatpush2.msra.mxu0 0.0
        %1118 = vmatprep.mubr.f32.mxu0 0.0
        %1119 = vmatmul.mubr.f32.gmra.mxu0 %v1052
        %v1120 = vpop.f32.mrf.mxu0
        %v1121 = vadd.f32 %v659, %v1120
        %v1122 = vpop.f32.mrf.mxu0
        %1123 = vdwg.mxu0
        %v1124 = vmul.f32 %v1121, %v430
        %v1125 = vsel %vm507, %v1124, 0.0
        %v1126 = vrot.slane %v1125, 4
        %v1127 = vadd.f32 %v1125, %v1126
        %v1128 = vrot.slane %v1127, 2
        %v1129 = vadd.f32 %v1127, %v1128
        %v1130 = vrot.slane %v1129, 1
        %v1131 = vadd.f32 %v1129, %v1130
        %v1132 = vmul.f32 %v1131, 0.125
        %v1133 = vsub.f32 %v1121, %v1132
        %v1134 = vmul.f32 %v1133, %v430
        %v1135 = vmul.f32 %v1134, %v1134
        %v1136 = vsel %vm507, %v1135, 0.0
        %v1137 = vrot.slane %v1136, 4
        %v1138 = vadd.f32 %v1136, %v1137
        %v1139 = vrot.slane %v1138, 2
        %v1140 = vadd.f32 %v1138, %v1139
        %v1141 = vrot.slane %v1140, 1
        %v1142 = vadd.f32 %v1140, %v1141
        %v1143 = vmul.f32 %v1142, 0.125
        %v1144 = vadd.f32 %v1143, 1e-05
        %v1145 = vrsqrt.pop %v1144
        %v1146 = vmul.f32 %v1133, %v1145
        %v1147 = vmul.f32 %v1146, %v759
        %v1148 = vadd.f32 %v1147, %v764
        %vm1149 = vcmp.ge.f32.partialorder %v1148, 0.0
        %v1150 = vmul.f32 %v1148, 0.01
        %v1151 = vsel %vm1149, %v1148, %v1150
        %v1153 = vsel %vm507, %v1151, 0
        %1155 = vmatprep.subr.mxu0 0.0
        %1156 = vmatpush1.msra.mxu0 0.0
        %1157 = vmatprep.subr.mxu0 0.0
        %1158 = vmatpush1.msra.mxu0 0.0
        %1159 = vmatprep.subr.mxu0 0.0
        %1160 = vmatpush1.msra.mxu0 0.0
        %1161 = vmatprep.subr.mxu0 0.0
        %1162 = vmatpush1.msra.mxu0 0.0
        %1163 = vmatprep.subr.mxu0 0.0
        %1164 = vmatpush1.msra.mxu0 0.0
        %1165 = vmatprep.subr.mxu0 0.0
        %1166 = vmatpush1.msra.mxu0 0.0
        %1167 = vmatprep.subr.mxu0 0.0
        %1168 = vmatpush1.msra.mxu0 0.0
        %1169 = vmatprep.subr.mxu0 0.0
        %1170 = vmatpush1.msra.mxu0 0.0
        %1171 = vmatprep.subr.mxu0 0.0
        %1172 = vmatpush1.msra.mxu0 0.0
        %1173 = vmatprep.subr.mxu0 0.0
        %1174 = vmatpush1.msra.mxu0 0.0
        %1175 = vmatprep.subr.mxu0 0.0
        %1176 = vmatpush1.msra.mxu0 0.0
        %1177 = vmatprep.subr.mxu0 0.0
        %1178 = vmatpush1.msra.mxu0 0.0
        %1179 = vmatprep.subr.mxu0 0.0
        %1180 = vmatpush1.msra.mxu0 %v416
        %1181 = vmatprep.subr.mxu0 0.0
        %1182 = vmatpush1.msra.mxu0 %v415
        %1183 = vmatprep.subr.mxu0 0.0
        %1184 = vmatpush1.msra.mxu0 %v414
        %1185 = vmatprep.subr.mxu0 0.0
        %1186 = vmatpush1.msra.mxu0 %v413
        %1187 = vmatprep.subr.mxu0 0.0
        %1188 = vmatpush2.msra.mxu0 0.0
        %1189 = vmatprep.subr.mxu0 0.0
        %1190 = vmatpush2.msra.mxu0 0.0
        %1191 = vmatprep.subr.mxu0 0.0
        %1192 = vmatpush2.msra.mxu0 0.0
        %1193 = vmatprep.subr.mxu0 0.0
        %1194 = vmatpush2.msra.mxu0 0.0
        %1195 = vmatprep.subr.mxu0 0.0
        %1196 = vmatpush2.msra.mxu0 0.0
        %1197 = vmatprep.subr.mxu0 0.0
        %1198 = vmatpush2.msra.mxu0 0.0
        %1199 = vmatprep.subr.mxu0 0.0
        %1200 = vmatpush2.msra.mxu0 0.0
        %1201 = vmatprep.subr.mxu0 0.0
        %1202 = vmatpush2.msra.mxu0 0.0
        %1203 = vmatprep.subr.mxu0 0.0
        %1204 = vmatpush2.msra.mxu0 0.0
        %1205 = vmatprep.subr.mxu0 0.0
        %1206 = vmatpush2.msra.mxu0 0.0
        %1207 = vmatprep.subr.mxu0 0.0
        %1208 = vmatpush2.msra.mxu0 0.0
        %1209 = vmatprep.subr.mxu0 0.0
        %1210 = vmatpush2.msra.mxu0 0.0
        %1211 = vmatprep.subr.mxu0 0.0
        %1212 = vmatpush2.msra.mxu0 0.0
        %1213 = vmatprep.subr.mxu0 0.0
        %1214 = vmatpush2.msra.mxu0 0.0
        %1215 = vmatprep.subr.mxu0 0.0
        %1216 = vmatpush2.msra.mxu0 0.0
        %1217 = vmatprep.subr.mxu0 0.0
        %1218 = vmatpush2.msra.mxu0 0.0
        %1219 = vmatprep.mubr.f32.mxu0 0.0
        %1220 = vmatmul.mubr.f32.gmra.mxu0 %v1153
        %v1221 = vpop.f32.mrf.mxu0
        %v1222 = vadd.f32 %v772, %v1221
        %v1223 = vpop.f32.mrf.mxu0
        %1224 = vdwg.mxu0
        %s1225 = scalar_lea.vmem %s391, 8 [#allocation10]
        %1226 = vst [vmem:[%s1225] sm:$0xff] %v1222
        %s1227 = sand.u32 %s186, 1
        %s1228 = scalar_lea.sflag [#allocation4], %s1227
        %s1229 = sand.u32 %s186, 1
        %s1230 = smul.addr %s1229, 16
        %s1231 = scalar_lea.vmem [#allocation10], %s1230
        // Predicated region
        $region61: #{tpu_custom_call.1} parent=43 // pred_check
          %p1232 = pneg %p196
        $region62: #{tpu_custom_call.1} parent=43 // pred_check_branch
          %1234 = sbr.rel (%p1232) target = $region64
        $region63: #{tpu_custom_call.1} parent=43 // pred_region
          %s1236 = ssub.s32 256, 256
          %1237 = vsyncadd %s1228, %s1236
          %s1238 = smul.addr %s27, 2
          %s1239 = smul.addr %s1238, 128
          %s1240 = scalar_lea.hbm %s6, %s1239
          %s1241 = sshll.u32 %s1231, 4
          %s1242 = int_to_ptr.vmem [resolvable:$true] %s1241
          %1247 = dma.vmem_to_hbm [thread:$0]  %s1242, 256, %s1240, %s1228, 128, 128, 8
        $region64: #{tpu_custom_call.1} parent=43 // pred_fallthru
          _
      $region44: #{tpu_custom_call.1} parent=5 // pred_fallthru
        _
      %p1248 = scmp.le.s32.totalorder 2, %s22
      // Predicated region
      $region65: #{tpu_custom_call.1} parent=5 // pred_check
        %p1249 = pneg %p1248
      $region66: #{tpu_custom_call.1} parent=5 // pred_check_branch
        %1251 = sbr.rel (%p1249) target = $region68
      $region67: #{tpu_custom_call.1} parent=5 // pred_region
        %s1252 = ssub.s32 %s22, 2
        // Predicated region
        $region69: #{tpu_custom_call.1} parent=67 // pred_check
          %p1253 = pneg %p202
        $region70: #{tpu_custom_call.1} parent=67 // pred_check_branch
          %1255 = sbr.rel (%p1253) target = $region72
        $region71: #{tpu_custom_call.1} parent=67 // pred_region
          %s1256 = sand.u32 %s187, 1
          %s1257 = scalar_lea.sflag [#allocation4], %s1256
          %s1258 = sand.u32 %s187, 1
          %s1259 = smul.addr %s1258, 16
          %s1260 = scalar_lea.vmem [#allocation10], %s1259
          %1261 = dma.done %s1257, 256
        $region72: #{tpu_custom_call.1} parent=67 // pred_fallthru
          _
      $region68: #{tpu_custom_call.1} parent=5 // pred_fallthru
        _
    $region6: #{tpu_custom_call.1} parent=1 // loop_footer
      %s26 = sadd.s32 1, %s22
    $region7: #{tpu_custom_call.1} parent=1 // loop_footer_branch
      %21 = sbr.rel target = $region3
    $region8: #{tpu_custom_call.1} parent=1 // loop_exit
      _
    %1262 = vsyncpa [#allocation3], 1
    %s1263 = scalar_lea.sflag [#allocation3], 1
    %1264 = vsyncpa %s1263, 1
    %1265 = vsyncpa [#allocation6], 1
    %s1266 = scalar_lea.sflag [#allocation6], 1
    %1267 = vsyncpa %s1266, 1
    %1268 = vsyncpa [#allocation9], 1
    %s1269 = scalar_lea.sflag [#allocation9], 1
    %1270 = vsyncpa %s1269, 1
    %1271 = vsyncpa [#allocation4], 1
    %s1272 = scalar_lea.sflag [#allocation4], 1
    %1273 = vsyncpa %s1272, 1

</llo_original>
